<compile_context>
chip_gen: v7x
topology: tpu7x:2x2x1
jax: 0.10.0
libtpu: 0.0.40
codegen_flags: <defaults>
</compile_context>

<pallas_src>
import functools

import jax
import jax.numpy as jnp
from jax import lax
from jax.experimental import pallas as pl
from jax.experimental.pallas import tpu as pltpu

C1, C2, C3 = 4, 8, 4      # channel widths of the three conv layers
K = 3                     # kernel size (padding=1, stride=1)


def _default_compute_dtype():
    """bf16 on chips with a bf16 VPU (v6e/v7x); f32 otherwise (v5e & older)."""
    try:
        kind = jax.devices()[0].device_kind.lower()
    except Exception:  # pragma: no cover - no device info available
        return jnp.float32
    if any(tag in kind for tag in ("v6", "v7", "tpu7")):
        return jnp.bfloat16
    return jnp.float32


def _pick_batch_tile(B, L, itemsize):
    """Batch rows per grid step for the (TB, L) 'length on lanes' layout.

    Bounds the live working set (~15 concurrently-live (TB, L) planes during
    the 4->8 / 8->4 layers) to ~192 KiB so accumulators stay in the 64-vreg
    (256 KiB) register file instead of spilling to VMEM.
    """
    live_planes = 15                    # cin + cout + shifted taps (worst layer)
    budget = 192 * 1024
    tb = budget // (live_planes * L * itemsize)
    tb = max(8, min(128, (tb // 8) * 8))
    if B <= tb:
        tb = B                          # full-batch tile (block == array dim is legal)
        # v7x megacore: keep >= 2 grid steps when the batch allows it so
        # dimension_semantics=("parallel",) can shard across both TCs.
        if B >= 16 and (B // 2) % 8 == 0:
            tb = B // 2
    return tb


def _encoder_conv_kernel(x_ref, w1_ref, b1_ref, w2_ref, b2_ref, w3_ref, b3_ref,
                         o_ref, *, length_axis, compute_dtype):
    """One batch tile of the full conv stack.

    Planes are per-channel 2-D tiles; `length_axis` selects which tile axis
    carries the sequence (1: (TB, L) batch-on-sublanes; 0: (L, TB)
    batch-on-lanes for small L).  Weights are flat (K*Cin*Cout,) f32 in SMEM,
    biases (Cout,) f32 in SMEM.
    """
    x = x_ref[...].astype(compute_dtype)
    L = x.shape[length_axis]

    # Hoisted position masks for the +-1 shifts (iota / broadcast emitted once
    # per kernel; JAX does not CSE broadcast_in_dim).
    pos = lax.broadcasted_iota(jnp.int32, x.shape, length_axis)
    not_first = pos >= 1            # zeroes the column that wrapped from l = L-1
    not_last = pos <= L - 2         # zeroes the column that wrapped from l = 0
    zero = jnp.zeros((), compute_dtype)

    def shift_taps(p):
        # prev[l] = p[l-1], next[l] = p[l+1] with zero padding at the edges.
        # pltpu.roll is an XLU rotation -> does not load the binding VALU slot.
        prev = jnp.where(not_first, pltpu.roll(p, 1, axis=length_axis), zero)
        nxt = jnp.where(not_last, pltpu.roll(p, L - 1, axis=length_axis), zero)
        return prev, p, nxt

    def conv_relu(planes, w_ref, b_ref, cin, cout):
        # ci-outer / co-inner: only cin + cout + 2 planes live at once
        # (vs 3*cin + cout when all taps are precomputed) -> no vreg spills.
        # Accumulators start as the bias splat: saves one add per element.
        accs = [jnp.full_like(planes[0], b_ref[co]) for co in range(cout)]
        for ci in range(cin):
            taps = shift_taps(planes[ci])
            for k in range(K):
                tap = taps[k]
                for co in range(cout):
                    w = w_ref[(k * cin + ci) * cout + co].astype(compute_dtype)
                    accs[co] = accs[co] + w * tap
        return [jnp.maximum(a, zero) for a in accs]

    h = conv_relu([x], w1_ref, b1_ref, 1, C1)       # 4 planes
    h = conv_relu(h, w2_ref, b2_ref, C1, C2)        # 8 planes
    h = conv_relu(h, w3_ref, b3_ref, C2, C3)        # 4 planes

    # Mean over length (XLU reduce), accumulated in f32 regardless of the
    # conv compute dtype.
    inv_l = jnp.float32(1.0 / L)
    cols = [jnp.sum(p, axis=length_axis, keepdims=True, dtype=jnp.float32) * inv_l
            for p in h]
    o_ref[...] = jnp.concatenate(cols, axis=length_axis).astype(o_ref.dtype)


def encoder_conv(x, params, *, layout="auto", compute_dtype=None,
                 block_rows=None):
    """x: (B, L) float32 -> (B, 4) float32."""
    B, L = x.shape
    w1, b1, w2, b2, w3, b3 = params

    if layout == "auto":
        # Batch-on-lanes recovers lane utilization when L is tiny (a (TB, L)
        # plane with L=16 uses 16/128 lanes).  Requires enough batch to fill
        # the 128 lanes and L aligned to the 8-row sublane tile.
        layout = ("batch_lanes" if (L <= 32 and L % 8 == 0 and B >= 64)
                  else "length_lanes")

    if compute_dtype is None:
        compute_dtype = _default_compute_dtype()
    if layout == "batch_lanes":
        # Sublane rotation of packed bf16 would need unpack/repack and the
        # tiles on this path are tiny anyway -> keep f32 here.
        compute_dtype = jnp.float32

    smem = pl.BlockSpec(memory_space=pltpu.MemorySpace.SMEM)

    if layout == "batch_lanes":
        xin = x.T                              # (L, B): L on sublanes, batch on lanes
        TB = 128 if B > 128 else B             # lane-axis tile: 128-aligned or full B
        grid = (pl.cdiv(B, TB),)
        x_spec = pl.BlockSpec((L, TB), lambda i: (0, i))
        out_spec = pl.BlockSpec((C3, TB), lambda i: (0, i))    # lane-dense output
        out_shape = jax.ShapeDtypeStruct((C3, B), jnp.float32)
        length_axis = 0
        in_tile_bytes = L * TB * 4
    else:
        xin = x                                # (B, L): batch on sublanes, L on lanes
        if block_rows is not None:
            TB = block_rows if B >= block_rows else B
        else:
            TB = _pick_batch_tile(B, L, jnp.dtype(compute_dtype).itemsize)
        grid = (pl.cdiv(B, TB),)
        x_spec = pl.BlockSpec((TB, L), lambda i: (i, 0))
        out_spec = pl.BlockSpec((TB, C3), lambda i: (i, 0))
        out_shape = jax.ShapeDtypeStruct((B, C3), jnp.float32)
        length_axis = 1
        in_tile_bytes = TB * L * 4

    # VMEM budget derived from the actual (double-buffered) input tile plus
    # headroom for Mosaic scratch/spill; well inside v7x's 64 MiB physical.
    vmem_limit = int(min(48 << 20, max(16 << 20, 4 * in_tile_bytes + (8 << 20))))

    kernel = functools.partial(_encoder_conv_kernel,
                               length_axis=length_axis,
                               compute_dtype=compute_dtype)

    out = pl.pallas_call(
        kernel,
        out_shape=out_shape,
        grid_spec=pltpu.PrefetchScalarGridSpec(
            num_scalar_prefetch=0,
            grid=grid,
            in_specs=[x_spec, smem, smem, smem, smem, smem, smem],
            out_specs=out_spec,
        ),
        compiler_params=pltpu.CompilerParams(
            dimension_semantics=("parallel",),   # shards grid across TCs on v7x
            vmem_limit_bytes=vmem_limit,
        ),
    )(xin, w1, b1, w2, b2, w3, b3)

    return out.T if layout == "batch_lanes" else out


def init_params(key):
    """Deterministic parameter init (PyTorch-style uniform bounds).

    Weights are stored flat in (K, Cin, Cout) row-major order so the kernel
    reads individual taps as scalars from SMEM; biases are 1-D (Cout,).
    """
    def conv_init(key, cin, cout, k=3):
        kw, kb = jax.random.split(key)
        bound = 1.0 / jnp.sqrt(cin * k)
        # PyTorch weight layout is (Cout, Cin, K); re-order to tap-major.
        w_pt = jax.random.uniform(kw, (cout, cin, k), jnp.float32,
                                  minval=-bound, maxval=bound)
        b = jax.random.uniform(kb, (cout,), jnp.float32,
                               minval=-bound, maxval=bound)
        w = jnp.transpose(w_pt, (2, 1, 0)).reshape(-1)   # flat (K*Cin*Cout,)
        return w, b

    k1, k2, k3 = jax.random.split(key, 3)
    w1, b1 = conv_init(k1, 1, C1)
    w2, b2 = conv_init(k2, C1, C2)
    w3, b3 = conv_init(k3, C2, C3)
    return w1, b1, w2, b2, w3, b3


def encoder_conv_ref(x, params):
    """Pure-JAX reference (same math, no Pallas) for correctness checks."""
    w1, b1, w2, b2, w3, b3 = params

    def conv_relu(h, w_flat, b, cin, cout):   # h: (B, L, Cin)
        w = w_flat.reshape(3, cin, cout)
        zero = jnp.zeros((h.shape[0], 1, h.shape[2]), h.dtype)
        hp = jnp.concatenate([zero, h[:, :-1, :]], axis=1)
        hn = jnp.concatenate([h[:, 1:, :], zero], axis=1)
        y = (jnp.einsum("blc,cd->bld", hp, w[0])
             + jnp.einsum("blc,cd->bld", h, w[1])
             + jnp.einsum("blc,cd->bld", hn, w[2]) + b)
        return jnp.maximum(y, 0.0)

    h = x[:, :, None]
    h = conv_relu(h, w1, b1, 1, C1)
    h = conv_relu(h, w2, b2, C1, C2)
    h = conv_relu(h, w3, b3, C2, C3)
    return jnp.mean(h, axis=1)


if __name__ == "__main__":
    key = jax.random.PRNGKey(0)
    kx, kp = jax.random.split(key)
    params = init_params(kp)

    # 1) Tiny canonical shape (B=2, L=16): single full-batch tile, f32 path.
    x = jax.random.normal(kx, (2, 16), dtype=jnp.float32)
    out = jax.block_until_ready(encoder_conv(x, params,
                                             compute_dtype=jnp.float32))
    ref = encoder_conv_ref(x, params)
    assert out.shape == (2, 4), out.shape
    assert jnp.allclose(out, ref, atol=1e-5, rtol=1e-5), (out, ref)

    # 2) Batched grid with a partial last batch tile (B=20, TB=8 -> grid=3).
    x2 = jax.random.normal(jax.random.PRNGKey(1), (20, 16), dtype=jnp.float32)
    out2 = jax.block_until_ready(encoder_conv(x2, params,
                                              layout="length_lanes",
                                              compute_dtype=jnp.float32,
                                              block_rows=8))
    ref2 = encoder_conv_ref(x2, params)
    assert out2.shape == (20, 4), out2.shape
    assert jnp.allclose(out2, ref2, atol=1e-5, rtol=1e-5), (out2, ref2)

    # 3) Lane-dense length (L=128): device-default compute dtype (bf16 on
    #    v6e/v7x, f32 on v5e), working-set-bounded TB, grid >= 2.
    x3 = jax.random.normal(jax.random.PRNGKey(2), (32, 128), dtype=jnp.float32)
    out3 = jax.block_until_ready(encoder_conv(x3, params))
    ref3 = encoder_conv_ref(x3, params)
    if _default_compute_dtype() == jnp.bfloat16:
        tol = dict(atol=3e-2, rtol=5e-2)     # bf16 conv chain
    else:
        tol = dict(atol=1e-5, rtol=1e-5)
    assert out3.shape == (32, 4), out3.shape
    assert jnp.allclose(out3, ref3, **tol), (out3, ref3)

    # 4) Small-L / large-B: batch on the 128-lane axis (auto-selected layout).
    x4 = jax.random.normal(jax.random.PRNGKey(3), (256, 16), dtype=jnp.float32)
    out4 = jax.block_until_ready(encoder_conv(x4, params))
    ref4 = encoder_conv_ref(x4, params)
    assert out4.shape == (256, 4), out4.shape
    assert jnp.allclose(out4, ref4, atol=1e-5, rtol=1e-5), (out4, ref4)

    print("KERNEL_OK")
</pallas_src>

<mosaic_0001>
module attributes {stable_mosaic.version = 11 : i64} {
  func.func @_encoder_conv_kernel(%arg0: i32, %arg1: memref<2x16xf32, #tpu.memory_space<vmem>>, %arg2: memref<12xf32, #tpu.memory_space<smem>>, %arg3: memref<4xf32, #tpu.memory_space<smem>>, %arg4: memref<96xf32, #tpu.memory_space<smem>>, %arg5: memref<8xf32, #tpu.memory_space<smem>>, %arg6: memref<96xf32, #tpu.memory_space<smem>>, %arg7: memref<4xf32, #tpu.memory_space<smem>>, %arg8: memref<2x4xf32, #tpu.memory_space<vmem>>) attributes {dimension_semantics = [#tpu.dimension_semantics<parallel>], iteration_bounds = array<i64: 1>, scalar_prefetch = 0 : i64, scratch_operands = 0 : i64, tpu.core_type = #tpu.core_type<tc>, window_params = [{transform_indices = @transform_0, window_bounds = array<i64: 2, 16>}, {transform_indices = @transform_1, window_bounds = array<i64: 12>}, {transform_indices = @transform_2, window_bounds = array<i64: 4>}, {transform_indices = @transform_3, window_bounds = array<i64: 96>}, {transform_indices = @transform_4, window_bounds = array<i64: 8>}, {transform_indices = @transform_5, window_bounds = array<i64: 96>}, {transform_indices = @transform_6, window_bounds = array<i64: 4>}, {transform_indices = @transform_7, window_bounds = array<i64: 2, 4>}]} {
    %c0 = arith.constant 0 : index
    %c0_0 = arith.constant 0 : index
    %0 = vector.load %arg1[%c0, %c0_0] : memref<2x16xf32, #tpu.memory_space<vmem>>, vector<2x16xf32>
    %1 = tpu.iota {dimensions = array<i32: 1>} : vector<2x16xi32>
    %c1_i32 = arith.constant 1 : i32
    %2 = vector.broadcast %c1_i32 : i32 to vector<2x16xi32>
    %3 = arith.cmpi sge, %1, %2 : vector<2x16xi32>
    %c14_i32 = arith.constant 14 : i32
    %4 = vector.broadcast %c14_i32 : i32 to vector<2x16xi32>
    %5 = arith.cmpi sle, %1, %4 : vector<2x16xi32>
    %c0_1 = arith.constant 0 : index
    %6 = memref.load %arg3[%c0_1] : memref<4xf32, #tpu.memory_space<smem>>
    %7 = vector.broadcast %6 : f32 to vector<2x16xf32>
    %c1 = arith.constant 1 : index
    %8 = memref.load %arg3[%c1] : memref<4xf32, #tpu.memory_space<smem>>
    %9 = vector.broadcast %8 : f32 to vector<2x16xf32>
    %c2 = arith.constant 2 : index
    %10 = memref.load %arg3[%c2] : memref<4xf32, #tpu.memory_space<smem>>
    %11 = vector.broadcast %10 : f32 to vector<2x16xf32>
    %c3 = arith.constant 3 : index
    %12 = memref.load %arg3[%c3] : memref<4xf32, #tpu.memory_space<smem>>
    %13 = vector.broadcast %12 : f32 to vector<2x16xf32>
    %c1_i32_2 = arith.constant 1 : i32
    %14 = tpu.dynamic_rotate %0 by %c1_i32_2 dim 1 : vector<2x16xf32>, i32 -> vector<2x16xf32>
    %cst = arith.constant 0.000000e+00 : f32
    %15 = vector.broadcast %cst : f32 to vector<2x16xf32>
    %16 = arith.select %3, %14, %15 : vector<2x16xi1>, vector<2x16xf32>
    %c15_i32 = arith.constant 15 : i32
    %17 = tpu.dynamic_rotate %0 by %c15_i32 dim 1 : vector<2x16xf32>, i32 -> vector<2x16xf32>
    %cst_3 = arith.constant 0.000000e+00 : f32
    %18 = vector.broadcast %cst_3 : f32 to vector<2x16xf32>
    %19 = arith.select %5, %17, %18 : vector<2x16xi1>, vector<2x16xf32>
    %c0_4 = arith.constant 0 : index
    %20 = memref.load %arg2[%c0_4] : memref<12xf32, #tpu.memory_space<smem>>
    %21 = vector.broadcast %20 : f32 to vector<2x16xf32>
    %22 = arith.mulf %21, %16 : vector<2x16xf32>
    %23 = arith.addf %7, %22 : vector<2x16xf32>
    %c1_5 = arith.constant 1 : index
    %24 = memref.load %arg2[%c1_5] : memref<12xf32, #tpu.memory_space<smem>>
    %25 = vector.broadcast %24 : f32 to vector<2x16xf32>
    %26 = arith.mulf %25, %16 : vector<2x16xf32>
    %27 = arith.addf %9, %26 : vector<2x16xf32>
    %c2_6 = arith.constant 2 : index
    %28 = memref.load %arg2[%c2_6] : memref<12xf32, #tpu.memory_space<smem>>
    %29 = vector.broadcast %28 : f32 to vector<2x16xf32>
    %30 = arith.mulf %29, %16 : vector<2x16xf32>
    %31 = arith.addf %11, %30 : vector<2x16xf32>
    %c3_7 = arith.constant 3 : index
    %32 = memref.load %arg2[%c3_7] : memref<12xf32, #tpu.memory_space<smem>>
    %33 = vector.broadcast %32 : f32 to vector<2x16xf32>
    %34 = arith.mulf %33, %16 : vector<2x16xf32>
    %35 = arith.addf %13, %34 : vector<2x16xf32>
    %c4 = arith.constant 4 : index
    %36 = memref.load %arg2[%c4] : memref<12xf32, #tpu.memory_space<smem>>
    %37 = vector.broadcast %36 : f32 to vector<2x16xf32>
    %38 = arith.mulf %37, %0 : vector<2x16xf32>
    %39 = arith.addf %23, %38 : vector<2x16xf32>
    %c5 = arith.constant 5 : index
    %40 = memref.load %arg2[%c5] : memref<12xf32, #tpu.memory_space<smem>>
    %41 = vector.broadcast %40 : f32 to vector<2x16xf32>
    %42 = arith.mulf %41, %0 : vector<2x16xf32>
    %43 = arith.addf %27, %42 : vector<2x16xf32>
    %c6 = arith.constant 6 : index
    %44 = memref.load %arg2[%c6] : memref<12xf32, #tpu.memory_space<smem>>
    %45 = vector.broadcast %44 : f32 to vector<2x16xf32>
    %46 = arith.mulf %45, %0 : vector<2x16xf32>
    %47 = arith.addf %31, %46 : vector<2x16xf32>
    %c7 = arith.constant 7 : index
    %48 = memref.load %arg2[%c7] : memref<12xf32, #tpu.memory_space<smem>>
    %49 = vector.broadcast %48 : f32 to vector<2x16xf32>
    %50 = arith.mulf %49, %0 : vector<2x16xf32>
    %51 = arith.addf %35, %50 : vector<2x16xf32>
    %c8 = arith.constant 8 : index
    %52 = memref.load %arg2[%c8] : memref<12xf32, #tpu.memory_space<smem>>
    %53 = vector.broadcast %52 : f32 to vector<2x16xf32>
    %54 = arith.mulf %53, %19 : vector<2x16xf32>
    %55 = arith.addf %39, %54 : vector<2x16xf32>
    %c9 = arith.constant 9 : index
    %56 = memref.load %arg2[%c9] : memref<12xf32, #tpu.memory_space<smem>>
    %57 = vector.broadcast %56 : f32 to vector<2x16xf32>
    %58 = arith.mulf %57, %19 : vector<2x16xf32>
    %59 = arith.addf %43, %58 : vector<2x16xf32>
    %c10 = arith.constant 10 : index
    %60 = memref.load %arg2[%c10] : memref<12xf32, #tpu.memory_space<smem>>
    %61 = vector.broadcast %60 : f32 to vector<2x16xf32>
    %62 = arith.mulf %61, %19 : vector<2x16xf32>
    %63 = arith.addf %47, %62 : vector<2x16xf32>
    %c11 = arith.constant 11 : index
    %64 = memref.load %arg2[%c11] : memref<12xf32, #tpu.memory_space<smem>>
    %65 = vector.broadcast %64 : f32 to vector<2x16xf32>
    %66 = arith.mulf %65, %19 : vector<2x16xf32>
    %67 = arith.addf %51, %66 : vector<2x16xf32>
    %cst_8 = arith.constant 0.000000e+00 : f32
    %68 = vector.broadcast %cst_8 : f32 to vector<2x16xf32>
    %69 = arith.maximumf %55, %68 : vector<2x16xf32>
    %cst_9 = arith.constant 0.000000e+00 : f32
    %70 = vector.broadcast %cst_9 : f32 to vector<2x16xf32>
    %71 = arith.maximumf %59, %70 : vector<2x16xf32>
    %cst_10 = arith.constant 0.000000e+00 : f32
    %72 = vector.broadcast %cst_10 : f32 to vector<2x16xf32>
    %73 = arith.maximumf %63, %72 : vector<2x16xf32>
    %cst_11 = arith.constant 0.000000e+00 : f32
    %74 = vector.broadcast %cst_11 : f32 to vector<2x16xf32>
    %75 = arith.maximumf %67, %74 : vector<2x16xf32>
    %c0_12 = arith.constant 0 : index
    %76 = memref.load %arg5[%c0_12] : memref<8xf32, #tpu.memory_space<smem>>
    %77 = vector.broadcast %76 : f32 to vector<2x16xf32>
    %c1_13 = arith.constant 1 : index
    %78 = memref.load %arg5[%c1_13] : memref<8xf32, #tpu.memory_space<smem>>
    %79 = vector.broadcast %78 : f32 to vector<2x16xf32>
    %c2_14 = arith.constant 2 : index
    %80 = memref.load %arg5[%c2_14] : memref<8xf32, #tpu.memory_space<smem>>
    %81 = vector.broadcast %80 : f32 to vector<2x16xf32>
    %c3_15 = arith.constant 3 : index
    %82 = memref.load %arg5[%c3_15] : memref<8xf32, #tpu.memory_space<smem>>
    %83 = vector.broadcast %82 : f32 to vector<2x16xf32>
    %c4_16 = arith.constant 4 : index
    %84 = memref.load %arg5[%c4_16] : memref<8xf32, #tpu.memory_space<smem>>
    %85 = vector.broadcast %84 : f32 to vector<2x16xf32>
    %c5_17 = arith.constant 5 : index
    %86 = memref.load %arg5[%c5_17] : memref<8xf32, #tpu.memory_space<smem>>
    %87 = vector.broadcast %86 : f32 to vector<2x16xf32>
    %c6_18 = arith.constant 6 : index
    %88 = memref.load %arg5[%c6_18] : memref<8xf32, #tpu.memory_space<smem>>
    %89 = vector.broadcast %88 : f32 to vector<2x16xf32>
    %c7_19 = arith.constant 7 : index
    %90 = memref.load %arg5[%c7_19] : memref<8xf32, #tpu.memory_space<smem>>
    %91 = vector.broadcast %90 : f32 to vector<2x16xf32>
    %c1_i32_20 = arith.constant 1 : i32
    %92 = tpu.dynamic_rotate %69 by %c1_i32_20 dim 1 : vector<2x16xf32>, i32 -> vector<2x16xf32>
    %cst_21 = arith.constant 0.000000e+00 : f32
    %93 = vector.broadcast %cst_21 : f32 to vector<2x16xf32>
    %94 = arith.select %3, %92, %93 : vector<2x16xi1>, vector<2x16xf32>
    %c15_i32_22 = arith.constant 15 : i32
    %95 = tpu.dynamic_rotate %69 by %c15_i32_22 dim 1 : vector<2x16xf32>, i32 -> vector<2x16xf32>
    %cst_23 = arith.constant 0.000000e+00 : f32
    %96 = vector.broadcast %cst_23 : f32 to vector<2x16xf32>
    %97 = arith.select %5, %95, %96 : vector<2x16xi1>, vector<2x16xf32>
    %c0_24 = arith.constant 0 : index
    %98 = memref.load %arg4[%c0_24] : memref<96xf32, #tpu.memory_space<smem>>
    %99 = vector.broadcast %98 : f32 to vector<2x16xf32>
    %100 = arith.mulf %99, %94 : vector<2x16xf32>
    %101 = arith.addf %77, %100 : vector<2x16xf32>
    %c1_25 = arith.constant 1 : index
    %102 = memref.load %arg4[%c1_25] : memref<96xf32, #tpu.memory_space<smem>>
    %103 = vector.broadcast %102 : f32 to vector<2x16xf32>
    %104 = arith.mulf %103, %94 : vector<2x16xf32>
    %105 = arith.addf %79, %104 : vector<2x16xf32>
    %c2_26 = arith.constant 2 : index
    %106 = memref.load %arg4[%c2_26] : memref<96xf32, #tpu.memory_space<smem>>
    %107 = vector.broadcast %106 : f32 to vector<2x16xf32>
    %108 = arith.mulf %107, %94 : vector<2x16xf32>
    %109 = arith.addf %81, %108 : vector<2x16xf32>
    %c3_27 = arith.constant 3 : index
    %110 = memref.load %arg4[%c3_27] : memref<96xf32, #tpu.memory_space<smem>>
    %111 = vector.broadcast %110 : f32 to vector<2x16xf32>
    %112 = arith.mulf %111, %94 : vector<2x16xf32>
    %113 = arith.addf %83, %112 : vector<2x16xf32>
    %c4_28 = arith.constant 4 : index
    %114 = memref.load %arg4[%c4_28] : memref<96xf32, #tpu.memory_space<smem>>
    %115 = vector.broadcast %114 : f32 to vector<2x16xf32>
    %116 = arith.mulf %115, %94 : vector<2x16xf32>
    %117 = arith.addf %85, %116 : vector<2x16xf32>
    %c5_29 = arith.constant 5 : index
    %118 = memref.load %arg4[%c5_29] : memref<96xf32, #tpu.memory_space<smem>>
    %119 = vector.broadcast %118 : f32 to vector<2x16xf32>
    %120 = arith.mulf %119, %94 : vector<2x16xf32>
    %121 = arith.addf %87, %120 : vector<2x16xf32>
    %c6_30 = arith.constant 6 : index
    %122 = memref.load %arg4[%c6_30] : memref<96xf32, #tpu.memory_space<smem>>
    %123 = vector.broadcast %122 : f32 to vector<2x16xf32>
    %124 = arith.mulf %123, %94 : vector<2x16xf32>
    %125 = arith.addf %89, %124 : vector<2x16xf32>
    %c7_31 = arith.constant 7 : index
    %126 = memref.load %arg4[%c7_31] : memref<96xf32, #tpu.memory_space<smem>>
    %127 = vector.broadcast %126 : f32 to vector<2x16xf32>
    %128 = arith.mulf %127, %94 : vector<2x16xf32>
    %129 = arith.addf %91, %128 : vector<2x16xf32>
    %c32 = arith.constant 32 : index
    %130 = memref.load %arg4[%c32] : memref<96xf32, #tpu.memory_space<smem>>
    %131 = vector.broadcast %130 : f32 to vector<2x16xf32>
    %132 = arith.mulf %131, %69 : vector<2x16xf32>
    %133 = arith.addf %101, %132 : vector<2x16xf32>
    %c33 = arith.constant 33 : index
    %134 = memref.load %arg4[%c33] : memref<96xf32, #tpu.memory_space<smem>>
    %135 = vector.broadcast %134 : f32 to vector<2x16xf32>
    %136 = arith.mulf %135, %69 : vector<2x16xf32>
    %137 = arith.addf %105, %136 : vector<2x16xf32>
    %c34 = arith.constant 34 : index
    %138 = memref.load %arg4[%c34] : memref<96xf32, #tpu.memory_space<smem>>
    %139 = vector.broadcast %138 : f32 to vector<2x16xf32>
    %140 = arith.mulf %139, %69 : vector<2x16xf32>
    %141 = arith.addf %109, %140 : vector<2x16xf32>
    %c35 = arith.constant 35 : index
    %142 = memref.load %arg4[%c35] : memref<96xf32, #tpu.memory_space<smem>>
    %143 = vector.broadcast %142 : f32 to vector<2x16xf32>
    %144 = arith.mulf %143, %69 : vector<2x16xf32>
    %145 = arith.addf %113, %144 : vector<2x16xf32>
    %c36 = arith.constant 36 : index
    %146 = memref.load %arg4[%c36] : memref<96xf32, #tpu.memory_space<smem>>
    %147 = vector.broadcast %146 : f32 to vector<2x16xf32>
    %148 = arith.mulf %147, %69 : vector<2x16xf32>
    %149 = arith.addf %117, %148 : vector<2x16xf32>
    %c37 = arith.constant 37 : index
    %150 = memref.load %arg4[%c37] : memref<96xf32, #tpu.memory_space<smem>>
    %151 = vector.broadcast %150 : f32 to vector<2x16xf32>
    %152 = arith.mulf %151, %69 : vector<2x16xf32>
    %153 = arith.addf %121, %152 : vector<2x16xf32>
    %c38 = arith.constant 38 : index
    %154 = memref.load %arg4[%c38] : memref<96xf32, #tpu.memory_space<smem>>
    %155 = vector.broadcast %154 : f32 to vector<2x16xf32>
    %156 = arith.mulf %155, %69 : vector<2x16xf32>
    %157 = arith.addf %125, %156 : vector<2x16xf32>
    %c39 = arith.constant 39 : index
    %158 = memref.load %arg4[%c39] : memref<96xf32, #tpu.memory_space<smem>>
    %159 = vector.broadcast %158 : f32 to vector<2x16xf32>
    %160 = arith.mulf %159, %69 : vector<2x16xf32>
    %161 = arith.addf %129, %160 : vector<2x16xf32>
    %c64 = arith.constant 64 : index
    %162 = memref.load %arg4[%c64] : memref<96xf32, #tpu.memory_space<smem>>
    %163 = vector.broadcast %162 : f32 to vector<2x16xf32>
    %164 = arith.mulf %163, %97 : vector<2x16xf32>
    %165 = arith.addf %133, %164 : vector<2x16xf32>
    %c65 = arith.constant 65 : index
    %166 = memref.load %arg4[%c65] : memref<96xf32, #tpu.memory_space<smem>>
    %167 = vector.broadcast %166 : f32 to vector<2x16xf32>
    %168 = arith.mulf %167, %97 : vector<2x16xf32>
    %169 = arith.addf %137, %168 : vector<2x16xf32>
    %c66 = arith.constant 66 : index
    %170 = memref.load %arg4[%c66] : memref<96xf32, #tpu.memory_space<smem>>
    %171 = vector.broadcast %170 : f32 to vector<2x16xf32>
    %172 = arith.mulf %171, %97 : vector<2x16xf32>
    %173 = arith.addf %141, %172 : vector<2x16xf32>
    %c67 = arith.constant 67 : index
    %174 = memref.load %arg4[%c67] : memref<96xf32, #tpu.memory_space<smem>>
    %175 = vector.broadcast %174 : f32 to vector<2x16xf32>
    %176 = arith.mulf %175, %97 : vector<2x16xf32>
    %177 = arith.addf %145, %176 : vector<2x16xf32>
    %c68 = arith.constant 68 : index
    %178 = memref.load %arg4[%c68] : memref<96xf32, #tpu.memory_space<smem>>
    %179 = vector.broadcast %178 : f32 to vector<2x16xf32>
    %180 = arith.mulf %179, %97 : vector<2x16xf32>
    %181 = arith.addf %149, %180 : vector<2x16xf32>
    %c69 = arith.constant 69 : index
    %182 = memref.load %arg4[%c69] : memref<96xf32, #tpu.memory_space<smem>>
    %183 = vector.broadcast %182 : f32 to vector<2x16xf32>
    %184 = arith.mulf %183, %97 : vector<2x16xf32>
    %185 = arith.addf %153, %184 : vector<2x16xf32>
    %c70 = arith.constant 70 : index
    %186 = memref.load %arg4[%c70] : memref<96xf32, #tpu.memory_space<smem>>
    %187 = vector.broadcast %186 : f32 to vector<2x16xf32>
    %188 = arith.mulf %187, %97 : vector<2x16xf32>
    %189 = arith.addf %157, %188 : vector<2x16xf32>
    %c71 = arith.constant 71 : index
    %190 = memref.load %arg4[%c71] : memref<96xf32, #tpu.memory_space<smem>>
    %191 = vector.broadcast %190 : f32 to vector<2x16xf32>
    %192 = arith.mulf %191, %97 : vector<2x16xf32>
    %193 = arith.addf %161, %192 : vector<2x16xf32>
    %c1_i32_32 = arith.constant 1 : i32
    %194 = tpu.dynamic_rotate %71 by %c1_i32_32 dim 1 : vector<2x16xf32>, i32 -> vector<2x16xf32>
    %cst_33 = arith.constant 0.000000e+00 : f32
    %195 = vector.broadcast %cst_33 : f32 to vector<2x16xf32>
    %196 = arith.select %3, %194, %195 : vector<2x16xi1>, vector<2x16xf32>
    %c15_i32_34 = arith.constant 15 : i32
    %197 = tpu.dynamic_rotate %71 by %c15_i32_34 dim 1 : vector<2x16xf32>, i32 -> vector<2x16xf32>
    %cst_35 = arith.constant 0.000000e+00 : f32
    %198 = vector.broadcast %cst_35 : f32 to vector<2x16xf32>
    %199 = arith.select %5, %197, %198 : vector<2x16xi1>, vector<2x16xf32>
    %c8_36 = arith.constant 8 : index
    %200 = memref.load %arg4[%c8_36] : memref<96xf32, #tpu.memory_space<smem>>
    %201 = vector.broadcast %200 : f32 to vector<2x16xf32>
    %202 = arith.mulf %201, %196 : vector<2x16xf32>
    %203 = arith.addf %165, %202 : vector<2x16xf32>
    %c9_37 = arith.constant 9 : index
    %204 = memref.load %arg4[%c9_37] : memref<96xf32, #tpu.memory_space<smem>>
    %205 = vector.broadcast %204 : f32 to vector<2x16xf32>
    %206 = arith.mulf %205, %196 : vector<2x16xf32>
    %207 = arith.addf %169, %206 : vector<2x16xf32>
    %c10_38 = arith.constant 10 : index
    %208 = memref.load %arg4[%c10_38] : memref<96xf32, #tpu.memory_space<smem>>
    %209 = vector.broadcast %208 : f32 to vector<2x16xf32>
    %210 = arith.mulf %209, %196 : vector<2x16xf32>
    %211 = arith.addf %173, %210 : vector<2x16xf32>
    %c11_39 = arith.constant 11 : index
    %212 = memref.load %arg4[%c11_39] : memref<96xf32, #tpu.memory_space<smem>>
    %213 = vector.broadcast %212 : f32 to vector<2x16xf32>
    %214 = arith.mulf %213, %196 : vector<2x16xf32>
    %215 = arith.addf %177, %214 : vector<2x16xf32>
    %c12 = arith.constant 12 : index
    %216 = memref.load %arg4[%c12] : memref<96xf32, #tpu.memory_space<smem>>
    %217 = vector.broadcast %216 : f32 to vector<2x16xf32>
    %218 = arith.mulf %217, %196 : vector<2x16xf32>
    %219 = arith.addf %181, %218 : vector<2x16xf32>
    %c13 = arith.constant 13 : index
    %220 = memref.load %arg4[%c13] : memref<96xf32, #tpu.memory_space<smem>>
    %221 = vector.broadcast %220 : f32 to vector<2x16xf32>
    %222 = arith.mulf %221, %196 : vector<2x16xf32>
    %223 = arith.addf %185, %222 : vector<2x16xf32>
    %c14 = arith.constant 14 : index
    %224 = memref.load %arg4[%c14] : memref<96xf32, #tpu.memory_space<smem>>
    %225 = vector.broadcast %224 : f32 to vector<2x16xf32>
    %226 = arith.mulf %225, %196 : vector<2x16xf32>
    %227 = arith.addf %189, %226 : vector<2x16xf32>
    %c15 = arith.constant 15 : index
    %228 = memref.load %arg4[%c15] : memref<96xf32, #tpu.memory_space<smem>>
    %229 = vector.broadcast %228 : f32 to vector<2x16xf32>
    %230 = arith.mulf %229, %196 : vector<2x16xf32>
    %231 = arith.addf %193, %230 : vector<2x16xf32>
    %c40 = arith.constant 40 : index
    %232 = memref.load %arg4[%c40] : memref<96xf32, #tpu.memory_space<smem>>
    %233 = vector.broadcast %232 : f32 to vector<2x16xf32>
    %234 = arith.mulf %233, %71 : vector<2x16xf32>
    %235 = arith.addf %203, %234 : vector<2x16xf32>
    %c41 = arith.constant 41 : index
    %236 = memref.load %arg4[%c41] : memref<96xf32, #tpu.memory_space<smem>>
    %237 = vector.broadcast %236 : f32 to vector<2x16xf32>
    %238 = arith.mulf %237, %71 : vector<2x16xf32>
    %239 = arith.addf %207, %238 : vector<2x16xf32>
    %c42 = arith.constant 42 : index
    %240 = memref.load %arg4[%c42] : memref<96xf32, #tpu.memory_space<smem>>
    %241 = vector.broadcast %240 : f32 to vector<2x16xf32>
    %242 = arith.mulf %241, %71 : vector<2x16xf32>
    %243 = arith.addf %211, %242 : vector<2x16xf32>
    %c43 = arith.constant 43 : index
    %244 = memref.load %arg4[%c43] : memref<96xf32, #tpu.memory_space<smem>>
    %245 = vector.broadcast %244 : f32 to vector<2x16xf32>
    %246 = arith.mulf %245, %71 : vector<2x16xf32>
    %247 = arith.addf %215, %246 : vector<2x16xf32>
    %c44 = arith.constant 44 : index
    %248 = memref.load %arg4[%c44] : memref<96xf32, #tpu.memory_space<smem>>
    %249 = vector.broadcast %248 : f32 to vector<2x16xf32>
    %250 = arith.mulf %249, %71 : vector<2x16xf32>
    %251 = arith.addf %219, %250 : vector<2x16xf32>
    %c45 = arith.constant 45 : index
    %252 = memref.load %arg4[%c45] : memref<96xf32, #tpu.memory_space<smem>>
    %253 = vector.broadcast %252 : f32 to vector<2x16xf32>
    %254 = arith.mulf %253, %71 : vector<2x16xf32>
    %255 = arith.addf %223, %254 : vector<2x16xf32>
    %c46 = arith.constant 46 : index
    %256 = memref.load %arg4[%c46] : memref<96xf32, #tpu.memory_space<smem>>
    %257 = vector.broadcast %256 : f32 to vector<2x16xf32>
    %258 = arith.mulf %257, %71 : vector<2x16xf32>
    %259 = arith.addf %227, %258 : vector<2x16xf32>
    %c47 = arith.constant 47 : index
    %260 = memref.load %arg4[%c47] : memref<96xf32, #tpu.memory_space<smem>>
    %261 = vector.broadcast %260 : f32 to vector<2x16xf32>
    %262 = arith.mulf %261, %71 : vector<2x16xf32>
    %263 = arith.addf %231, %262 : vector<2x16xf32>
    %c72 = arith.constant 72 : index
    %264 = memref.load %arg4[%c72] : memref<96xf32, #tpu.memory_space<smem>>
    %265 = vector.broadcast %264 : f32 to vector<2x16xf32>
    %266 = arith.mulf %265, %199 : vector<2x16xf32>
    %267 = arith.addf %235, %266 : vector<2x16xf32>
    %c73 = arith.constant 73 : index
    %268 = memref.load %arg4[%c73] : memref<96xf32, #tpu.memory_space<smem>>
    %269 = vector.broadcast %268 : f32 to vector<2x16xf32>
    %270 = arith.mulf %269, %199 : vector<2x16xf32>
    %271 = arith.addf %239, %270 : vector<2x16xf32>
    %c74 = arith.constant 74 : index
    %272 = memref.load %arg4[%c74] : memref<96xf32, #tpu.memory_space<smem>>
    %273 = vector.broadcast %272 : f32 to vector<2x16xf32>
    %274 = arith.mulf %273, %199 : vector<2x16xf32>
    %275 = arith.addf %243, %274 : vector<2x16xf32>
    %c75 = arith.constant 75 : index
    %276 = memref.load %arg4[%c75] : memref<96xf32, #tpu.memory_space<smem>>
    %277 = vector.broadcast %276 : f32 to vector<2x16xf32>
    %278 = arith.mulf %277, %199 : vector<2x16xf32>
    %279 = arith.addf %247, %278 : vector<2x16xf32>
    %c76 = arith.constant 76 : index
    %280 = memref.load %arg4[%c76] : memref<96xf32, #tpu.memory_space<smem>>
    %281 = vector.broadcast %280 : f32 to vector<2x16xf32>
    %282 = arith.mulf %281, %199 : vector<2x16xf32>
    %283 = arith.addf %251, %282 : vector<2x16xf32>
    %c77 = arith.constant 77 : index
    %284 = memref.load %arg4[%c77] : memref<96xf32, #tpu.memory_space<smem>>
    %285 = vector.broadcast %284 : f32 to vector<2x16xf32>
    %286 = arith.mulf %285, %199 : vector<2x16xf32>
    %287 = arith.addf %255, %286 : vector<2x16xf32>
    %c78 = arith.constant 78 : index
    %288 = memref.load %arg4[%c78] : memref<96xf32, #tpu.memory_space<smem>>
    %289 = vector.broadcast %288 : f32 to vector<2x16xf32>
    %290 = arith.mulf %289, %199 : vector<2x16xf32>
    %291 = arith.addf %259, %290 : vector<2x16xf32>
    %c79 = arith.constant 79 : index
    %292 = memref.load %arg4[%c79] : memref<96xf32, #tpu.memory_space<smem>>
    %293 = vector.broadcast %292 : f32 to vector<2x16xf32>
    %294 = arith.mulf %293, %199 : vector<2x16xf32>
    %295 = arith.addf %263, %294 : vector<2x16xf32>
    %c1_i32_40 = arith.constant 1 : i32
    %296 = tpu.dynamic_rotate %73 by %c1_i32_40 dim 1 : vector<2x16xf32>, i32 -> vector<2x16xf32>
    %cst_41 = arith.constant 0.000000e+00 : f32
    %297 = vector.broadcast %cst_41 : f32 to vector<2x16xf32>
    %298 = arith.select %3, %296, %297 : vector<2x16xi1>, vector<2x16xf32>
    %c15_i32_42 = arith.constant 15 : i32
    %299 = tpu.dynamic_rotate %73 by %c15_i32_42 dim 1 : vector<2x16xf32>, i32 -> vector<2x16xf32>
    %cst_43 = arith.constant 0.000000e+00 : f32
    %300 = vector.broadcast %cst_43 : f32 to vector<2x16xf32>
    %301 = arith.select %5, %299, %300 : vector<2x16xi1>, vector<2x16xf32>
    %c16 = arith.constant 16 : index
    %302 = memref.load %arg4[%c16] : memref<96xf32, #tpu.memory_space<smem>>
    %303 = vector.broadcast %302 : f32 to vector<2x16xf32>
    %304 = arith.mulf %303, %298 : vector<2x16xf32>
    %305 = arith.addf %267, %304 : vector<2x16xf32>
    %c17 = arith.constant 17 : index
    %306 = memref.load %arg4[%c17] : memref<96xf32, #tpu.memory_space<smem>>
    %307 = vector.broadcast %306 : f32 to vector<2x16xf32>
    %308 = arith.mulf %307, %298 : vector<2x16xf32>
    %309 = arith.addf %271, %308 : vector<2x16xf32>
    %c18 = arith.constant 18 : index
    %310 = memref.load %arg4[%c18] : memref<96xf32, #tpu.memory_space<smem>>
    %311 = vector.broadcast %310 : f32 to vector<2x16xf32>
    %312 = arith.mulf %311, %298 : vector<2x16xf32>
    %313 = arith.addf %275, %312 : vector<2x16xf32>
    %c19 = arith.constant 19 : index
    %314 = memref.load %arg4[%c19] : memref<96xf32, #tpu.memory_space<smem>>
    %315 = vector.broadcast %314 : f32 to vector<2x16xf32>
    %316 = arith.mulf %315, %298 : vector<2x16xf32>
    %317 = arith.addf %279, %316 : vector<2x16xf32>
    %c20 = arith.constant 20 : index
    %318 = memref.load %arg4[%c20] : memref<96xf32, #tpu.memory_space<smem>>
    %319 = vector.broadcast %318 : f32 to vector<2x16xf32>
    %320 = arith.mulf %319, %298 : vector<2x16xf32>
    %321 = arith.addf %283, %320 : vector<2x16xf32>
    %c21 = arith.constant 21 : index
    %322 = memref.load %arg4[%c21] : memref<96xf32, #tpu.memory_space<smem>>
    %323 = vector.broadcast %322 : f32 to vector<2x16xf32>
    %324 = arith.mulf %323, %298 : vector<2x16xf32>
    %325 = arith.addf %287, %324 : vector<2x16xf32>
    %c22 = arith.constant 22 : index
    %326 = memref.load %arg4[%c22] : memref<96xf32, #tpu.memory_space<smem>>
    %327 = vector.broadcast %326 : f32 to vector<2x16xf32>
    %328 = arith.mulf %327, %298 : vector<2x16xf32>
    %329 = arith.addf %291, %328 : vector<2x16xf32>
    %c23 = arith.constant 23 : index
    %330 = memref.load %arg4[%c23] : memref<96xf32, #tpu.memory_space<smem>>
    %331 = vector.broadcast %330 : f32 to vector<2x16xf32>
    %332 = arith.mulf %331, %298 : vector<2x16xf32>
    %333 = arith.addf %295, %332 : vector<2x16xf32>
    %c48 = arith.constant 48 : index
    %334 = memref.load %arg4[%c48] : memref<96xf32, #tpu.memory_space<smem>>
    %335 = vector.broadcast %334 : f32 to vector<2x16xf32>
    %336 = arith.mulf %335, %73 : vector<2x16xf32>
    %337 = arith.addf %305, %336 : vector<2x16xf32>
    %c49 = arith.constant 49 : index
    %338 = memref.load %arg4[%c49] : memref<96xf32, #tpu.memory_space<smem>>
    %339 = vector.broadcast %338 : f32 to vector<2x16xf32>
    %340 = arith.mulf %339, %73 : vector<2x16xf32>
    %341 = arith.addf %309, %340 : vector<2x16xf32>
    %c50 = arith.constant 50 : index
    %342 = memref.load %arg4[%c50] : memref<96xf32, #tpu.memory_space<smem>>
    %343 = vector.broadcast %342 : f32 to vector<2x16xf32>
    %344 = arith.mulf %343, %73 : vector<2x16xf32>
    %345 = arith.addf %313, %344 : vector<2x16xf32>
    %c51 = arith.constant 51 : index
    %346 = memref.load %arg4[%c51] : memref<96xf32, #tpu.memory_space<smem>>
    %347 = vector.broadcast %346 : f32 to vector<2x16xf32>
    %348 = arith.mulf %347, %73 : vector<2x16xf32>
    %349 = arith.addf %317, %348 : vector<2x16xf32>
    %c52 = arith.constant 52 : index
    %350 = memref.load %arg4[%c52] : memref<96xf32, #tpu.memory_space<smem>>
    %351 = vector.broadcast %350 : f32 to vector<2x16xf32>
    %352 = arith.mulf %351, %73 : vector<2x16xf32>
    %353 = arith.addf %321, %352 : vector<2x16xf32>
    %c53 = arith.constant 53 : index
    %354 = memref.load %arg4[%c53] : memref<96xf32, #tpu.memory_space<smem>>
    %355 = vector.broadcast %354 : f32 to vector<2x16xf32>
    %356 = arith.mulf %355, %73 : vector<2x16xf32>
    %357 = arith.addf %325, %356 : vector<2x16xf32>
    %c54 = arith.constant 54 : index
    %358 = memref.load %arg4[%c54] : memref<96xf32, #tpu.memory_space<smem>>
    %359 = vector.broadcast %358 : f32 to vector<2x16xf32>
    %360 = arith.mulf %359, %73 : vector<2x16xf32>
    %361 = arith.addf %329, %360 : vector<2x16xf32>
    %c55 = arith.constant 55 : index
    %362 = memref.load %arg4[%c55] : memref<96xf32, #tpu.memory_space<smem>>
    %363 = vector.broadcast %362 : f32 to vector<2x16xf32>
    %364 = arith.mulf %363, %73 : vector<2x16xf32>
    %365 = arith.addf %333, %364 : vector<2x16xf32>
    %c80 = arith.constant 80 : index
    %366 = memref.load %arg4[%c80] : memref<96xf32, #tpu.memory_space<smem>>
    %367 = vector.broadcast %366 : f32 to vector<2x16xf32>
    %368 = arith.mulf %367, %301 : vector<2x16xf32>
    %369 = arith.addf %337, %368 : vector<2x16xf32>
    %c81 = arith.constant 81 : index
    %370 = memref.load %arg4[%c81] : memref<96xf32, #tpu.memory_space<smem>>
    %371 = vector.broadcast %370 : f32 to vector<2x16xf32>
    %372 = arith.mulf %371, %301 : vector<2x16xf32>
    %373 = arith.addf %341, %372 : vector<2x16xf32>
    %c82 = arith.constant 82 : index
    %374 = memref.load %arg4[%c82] : memref<96xf32, #tpu.memory_space<smem>>
    %375 = vector.broadcast %374 : f32 to vector<2x16xf32>
    %376 = arith.mulf %375, %301 : vector<2x16xf32>
    %377 = arith.addf %345, %376 : vector<2x16xf32>
    %c83 = arith.constant 83 : index
    %378 = memref.load %arg4[%c83] : memref<96xf32, #tpu.memory_space<smem>>
    %379 = vector.broadcast %378 : f32 to vector<2x16xf32>
    %380 = arith.mulf %379, %301 : vector<2x16xf32>
    %381 = arith.addf %349, %380 : vector<2x16xf32>
    %c84 = arith.constant 84 : index
    %382 = memref.load %arg4[%c84] : memref<96xf32, #tpu.memory_space<smem>>
    %383 = vector.broadcast %382 : f32 to vector<2x16xf32>
    %384 = arith.mulf %383, %301 : vector<2x16xf32>
    %385 = arith.addf %353, %384 : vector<2x16xf32>
    %c85 = arith.constant 85 : index
    %386 = memref.load %arg4[%c85] : memref<96xf32, #tpu.memory_space<smem>>
    %387 = vector.broadcast %386 : f32 to vector<2x16xf32>
    %388 = arith.mulf %387, %301 : vector<2x16xf32>
    %389 = arith.addf %357, %388 : vector<2x16xf32>
    %c86 = arith.constant 86 : index
    %390 = memref.load %arg4[%c86] : memref<96xf32, #tpu.memory_space<smem>>
    %391 = vector.broadcast %390 : f32 to vector<2x16xf32>
    %392 = arith.mulf %391, %301 : vector<2x16xf32>
    %393 = arith.addf %361, %392 : vector<2x16xf32>
    %c87 = arith.constant 87 : index
    %394 = memref.load %arg4[%c87] : memref<96xf32, #tpu.memory_space<smem>>
    %395 = vector.broadcast %394 : f32 to vector<2x16xf32>
    %396 = arith.mulf %395, %301 : vector<2x16xf32>
    %397 = arith.addf %365, %396 : vector<2x16xf32>
    %c1_i32_44 = arith.constant 1 : i32
    %398 = tpu.dynamic_rotate %75 by %c1_i32_44 dim 1 : vector<2x16xf32>, i32 -> vector<2x16xf32>
    %cst_45 = arith.constant 0.000000e+00 : f32
    %399 = vector.broadcast %cst_45 : f32 to vector<2x16xf32>
    %400 = arith.select %3, %398, %399 : vector<2x16xi1>, vector<2x16xf32>
    %c15_i32_46 = arith.constant 15 : i32
    %401 = tpu.dynamic_rotate %75 by %c15_i32_46 dim 1 : vector<2x16xf32>, i32 -> vector<2x16xf32>
    %cst_47 = arith.constant 0.000000e+00 : f32
    %402 = vector.broadcast %cst_47 : f32 to vector<2x16xf32>
    %403 = arith.select %5, %401, %402 : vector<2x16xi1>, vector<2x16xf32>
    %c24 = arith.constant 24 : index
    %404 = memref.load %arg4[%c24] : memref<96xf32, #tpu.memory_space<smem>>
    %405 = vector.broadcast %404 : f32 to vector<2x16xf32>
    %406 = arith.mulf %405, %400 : vector<2x16xf32>
    %407 = arith.addf %369, %406 : vector<2x16xf32>
    %c25 = arith.constant 25 : index
    %408 = memref.load %arg4[%c25] : memref<96xf32, #tpu.memory_space<smem>>
    %409 = vector.broadcast %408 : f32 to vector<2x16xf32>
    %410 = arith.mulf %409, %400 : vector<2x16xf32>
    %411 = arith.addf %373, %410 : vector<2x16xf32>
    %c26 = arith.constant 26 : index
    %412 = memref.load %arg4[%c26] : memref<96xf32, #tpu.memory_space<smem>>
    %413 = vector.broadcast %412 : f32 to vector<2x16xf32>
    %414 = arith.mulf %413, %400 : vector<2x16xf32>
    %415 = arith.addf %377, %414 : vector<2x16xf32>
    %c27 = arith.constant 27 : index
    %416 = memref.load %arg4[%c27] : memref<96xf32, #tpu.memory_space<smem>>
    %417 = vector.broadcast %416 : f32 to vector<2x16xf32>
    %418 = arith.mulf %417, %400 : vector<2x16xf32>
    %419 = arith.addf %381, %418 : vector<2x16xf32>
    %c28 = arith.constant 28 : index
    %420 = memref.load %arg4[%c28] : memref<96xf32, #tpu.memory_space<smem>>
    %421 = vector.broadcast %420 : f32 to vector<2x16xf32>
    %422 = arith.mulf %421, %400 : vector<2x16xf32>
    %423 = arith.addf %385, %422 : vector<2x16xf32>
    %c29 = arith.constant 29 : index
    %424 = memref.load %arg4[%c29] : memref<96xf32, #tpu.memory_space<smem>>
    %425 = vector.broadcast %424 : f32 to vector<2x16xf32>
    %426 = arith.mulf %425, %400 : vector<2x16xf32>
    %427 = arith.addf %389, %426 : vector<2x16xf32>
    %c30 = arith.constant 30 : index
    %428 = memref.load %arg4[%c30] : memref<96xf32, #tpu.memory_space<smem>>
    %429 = vector.broadcast %428 : f32 to vector<2x16xf32>
    %430 = arith.mulf %429, %400 : vector<2x16xf32>
    %431 = arith.addf %393, %430 : vector<2x16xf32>
    %c31 = arith.constant 31 : index
    %432 = memref.load %arg4[%c31] : memref<96xf32, #tpu.memory_space<smem>>
    %433 = vector.broadcast %432 : f32 to vector<2x16xf32>
    %434 = arith.mulf %433, %400 : vector<2x16xf32>
    %435 = arith.addf %397, %434 : vector<2x16xf32>
    %c56 = arith.constant 56 : index
    %436 = memref.load %arg4[%c56] : memref<96xf32, #tpu.memory_space<smem>>
    %437 = vector.broadcast %436 : f32 to vector<2x16xf32>
    %438 = arith.mulf %437, %75 : vector<2x16xf32>
    %439 = arith.addf %407, %438 : vector<2x16xf32>
    %c57 = arith.constant 57 : index
    %440 = memref.load %arg4[%c57] : memref<96xf32, #tpu.memory_space<smem>>
    %441 = vector.broadcast %440 : f32 to vector<2x16xf32>
    %442 = arith.mulf %441, %75 : vector<2x16xf32>
    %443 = arith.addf %411, %442 : vector<2x16xf32>
    %c58 = arith.constant 58 : index
    %444 = memref.load %arg4[%c58] : memref<96xf32, #tpu.memory_space<smem>>
    %445 = vector.broadcast %444 : f32 to vector<2x16xf32>
    %446 = arith.mulf %445, %75 : vector<2x16xf32>
    %447 = arith.addf %415, %446 : vector<2x16xf32>
    %c59 = arith.constant 59 : index
    %448 = memref.load %arg4[%c59] : memref<96xf32, #tpu.memory_space<smem>>
    %449 = vector.broadcast %448 : f32 to vector<2x16xf32>
    %450 = arith.mulf %449, %75 : vector<2x16xf32>
    %451 = arith.addf %419, %450 : vector<2x16xf32>
    %c60 = arith.constant 60 : index
    %452 = memref.load %arg4[%c60] : memref<96xf32, #tpu.memory_space<smem>>
    %453 = vector.broadcast %452 : f32 to vector<2x16xf32>
    %454 = arith.mulf %453, %75 : vector<2x16xf32>
    %455 = arith.addf %423, %454 : vector<2x16xf32>
    %c61 = arith.constant 61 : index
    %456 = memref.load %arg4[%c61] : memref<96xf32, #tpu.memory_space<smem>>
    %457 = vector.broadcast %456 : f32 to vector<2x16xf32>
    %458 = arith.mulf %457, %75 : vector<2x16xf32>
    %459 = arith.addf %427, %458 : vector<2x16xf32>
    %c62 = arith.constant 62 : index
    %460 = memref.load %arg4[%c62] : memref<96xf32, #tpu.memory_space<smem>>
    %461 = vector.broadcast %460 : f32 to vector<2x16xf32>
    %462 = arith.mulf %461, %75 : vector<2x16xf32>
    %463 = arith.addf %431, %462 : vector<2x16xf32>
    %c63 = arith.constant 63 : index
    %464 = memref.load %arg4[%c63] : memref<96xf32, #tpu.memory_space<smem>>
    %465 = vector.broadcast %464 : f32 to vector<2x16xf32>
    %466 = arith.mulf %465, %75 : vector<2x16xf32>
    %467 = arith.addf %435, %466 : vector<2x16xf32>
    %c88 = arith.constant 88 : index
    %468 = memref.load %arg4[%c88] : memref<96xf32, #tpu.memory_space<smem>>
    %469 = vector.broadcast %468 : f32 to vector<2x16xf32>
    %470 = arith.mulf %469, %403 : vector<2x16xf32>
    %471 = arith.addf %439, %470 : vector<2x16xf32>
    %c89 = arith.constant 89 : index
    %472 = memref.load %arg4[%c89] : memref<96xf32, #tpu.memory_space<smem>>
    %473 = vector.broadcast %472 : f32 to vector<2x16xf32>
    %474 = arith.mulf %473, %403 : vector<2x16xf32>
    %475 = arith.addf %443, %474 : vector<2x16xf32>
    %c90 = arith.constant 90 : index
    %476 = memref.load %arg4[%c90] : memref<96xf32, #tpu.memory_space<smem>>
    %477 = vector.broadcast %476 : f32 to vector<2x16xf32>
    %478 = arith.mulf %477, %403 : vector<2x16xf32>
    %479 = arith.addf %447, %478 : vector<2x16xf32>
    %c91 = arith.constant 91 : index
    %480 = memref.load %arg4[%c91] : memref<96xf32, #tpu.memory_space<smem>>
    %481 = vector.broadcast %480 : f32 to vector<2x16xf32>
    %482 = arith.mulf %481, %403 : vector<2x16xf32>
    %483 = arith.addf %451, %482 : vector<2x16xf32>
    %c92 = arith.constant 92 : index
    %484 = memref.load %arg4[%c92] : memref<96xf32, #tpu.memory_space<smem>>
    %485 = vector.broadcast %484 : f32 to vector<2x16xf32>
    %486 = arith.mulf %485, %403 : vector<2x16xf32>
    %487 = arith.addf %455, %486 : vector<2x16xf32>
    %c93 = arith.constant 93 : index
    %488 = memref.load %arg4[%c93] : memref<96xf32, #tpu.memory_space<smem>>
    %489 = vector.broadcast %488 : f32 to vector<2x16xf32>
    %490 = arith.mulf %489, %403 : vector<2x16xf32>
    %491 = arith.addf %459, %490 : vector<2x16xf32>
    %c94 = arith.constant 94 : index
    %492 = memref.load %arg4[%c94] : memref<96xf32, #tpu.memory_space<smem>>
    %493 = vector.broadcast %492 : f32 to vector<2x16xf32>
    %494 = arith.mulf %493, %403 : vector<2x16xf32>
    %495 = arith.addf %463, %494 : vector<2x16xf32>
    %c95 = arith.constant 95 : index
    %496 = memref.load %arg4[%c95] : memref<96xf32, #tpu.memory_space<smem>>
    %497 = vector.broadcast %496 : f32 to vector<2x16xf32>
    %498 = arith.mulf %497, %403 : vector<2x16xf32>
    %499 = arith.addf %467, %498 : vector<2x16xf32>
    %cst_48 = arith.constant 0.000000e+00 : f32
    %500 = vector.broadcast %cst_48 : f32 to vector<2x16xf32>
    %501 = arith.maximumf %471, %500 : vector<2x16xf32>
    %cst_49 = arith.constant 0.000000e+00 : f32
    %502 = vector.broadcast %cst_49 : f32 to vector<2x16xf32>
    %503 = arith.maximumf %475, %502 : vector<2x16xf32>
    %cst_50 = arith.constant 0.000000e+00 : f32
    %504 = vector.broadcast %cst_50 : f32 to vector<2x16xf32>
    %505 = arith.maximumf %479, %504 : vector<2x16xf32>
    %cst_51 = arith.constant 0.000000e+00 : f32
    %506 = vector.broadcast %cst_51 : f32 to vector<2x16xf32>
    %507 = arith.maximumf %483, %506 : vector<2x16xf32>
    %cst_52 = arith.constant 0.000000e+00 : f32
    %508 = vector.broadcast %cst_52 : f32 to vector<2x16xf32>
    %509 = arith.maximumf %487, %508 : vector<2x16xf32>
    %cst_53 = arith.constant 0.000000e+00 : f32
    %510 = vector.broadcast %cst_53 : f32 to vector<2x16xf32>
    %511 = arith.maximumf %491, %510 : vector<2x16xf32>
    %cst_54 = arith.constant 0.000000e+00 : f32
    %512 = vector.broadcast %cst_54 : f32 to vector<2x16xf32>
    %513 = arith.maximumf %495, %512 : vector<2x16xf32>
    %cst_55 = arith.constant 0.000000e+00 : f32
    %514 = vector.broadcast %cst_55 : f32 to vector<2x16xf32>
    %515 = arith.maximumf %499, %514 : vector<2x16xf32>
    %c0_56 = arith.constant 0 : index
    %516 = memref.load %arg7[%c0_56] : memref<4xf32, #tpu.memory_space<smem>>
    %517 = vector.broadcast %516 : f32 to vector<2x16xf32>
    %c1_57 = arith.constant 1 : index
    %518 = memref.load %arg7[%c1_57] : memref<4xf32, #tpu.memory_space<smem>>
    %519 = vector.broadcast %518 : f32 to vector<2x16xf32>
    %c2_58 = arith.constant 2 : index
    %520 = memref.load %arg7[%c2_58] : memref<4xf32, #tpu.memory_space<smem>>
    %521 = vector.broadcast %520 : f32 to vector<2x16xf32>
    %c3_59 = arith.constant 3 : index
    %522 = memref.load %arg7[%c3_59] : memref<4xf32, #tpu.memory_space<smem>>
    %523 = vector.broadcast %522 : f32 to vector<2x16xf32>
    %c1_i32_60 = arith.constant 1 : i32
    %524 = tpu.dynamic_rotate %501 by %c1_i32_60 dim 1 : vector<2x16xf32>, i32 -> vector<2x16xf32>
    %cst_61 = arith.constant 0.000000e+00 : f32
    %525 = vector.broadcast %cst_61 : f32 to vector<2x16xf32>
    %526 = arith.select %3, %524, %525 : vector<2x16xi1>, vector<2x16xf32>
    %c15_i32_62 = arith.constant 15 : i32
    %527 = tpu.dynamic_rotate %501 by %c15_i32_62 dim 1 : vector<2x16xf32>, i32 -> vector<2x16xf32>
    %cst_63 = arith.constant 0.000000e+00 : f32
    %528 = vector.broadcast %cst_63 : f32 to vector<2x16xf32>
    %529 = arith.select %5, %527, %528 : vector<2x16xi1>, vector<2x16xf32>
    %c0_64 = arith.constant 0 : index
    %530 = memref.load %arg6[%c0_64] : memref<96xf32, #tpu.memory_space<smem>>
    %531 = vector.broadcast %530 : f32 to vector<2x16xf32>
    %532 = arith.mulf %531, %526 : vector<2x16xf32>
    %533 = arith.addf %517, %532 : vector<2x16xf32>
    %c1_65 = arith.constant 1 : index
    %534 = memref.load %arg6[%c1_65] : memref<96xf32, #tpu.memory_space<smem>>
    %535 = vector.broadcast %534 : f32 to vector<2x16xf32>
    %536 = arith.mulf %535, %526 : vector<2x16xf32>
    %537 = arith.addf %519, %536 : vector<2x16xf32>
    %c2_66 = arith.constant 2 : index
    %538 = memref.load %arg6[%c2_66] : memref<96xf32, #tpu.memory_space<smem>>
    %539 = vector.broadcast %538 : f32 to vector<2x16xf32>
    %540 = arith.mulf %539, %526 : vector<2x16xf32>
    %541 = arith.addf %521, %540 : vector<2x16xf32>
    %c3_67 = arith.constant 3 : index
    %542 = memref.load %arg6[%c3_67] : memref<96xf32, #tpu.memory_space<smem>>
    %543 = vector.broadcast %542 : f32 to vector<2x16xf32>
    %544 = arith.mulf %543, %526 : vector<2x16xf32>
    %545 = arith.addf %523, %544 : vector<2x16xf32>
    %c32_68 = arith.constant 32 : index
    %546 = memref.load %arg6[%c32_68] : memref<96xf32, #tpu.memory_space<smem>>
    %547 = vector.broadcast %546 : f32 to vector<2x16xf32>
    %548 = arith.mulf %547, %501 : vector<2x16xf32>
    %549 = arith.addf %533, %548 : vector<2x16xf32>
    %c33_69 = arith.constant 33 : index
    %550 = memref.load %arg6[%c33_69] : memref<96xf32, #tpu.memory_space<smem>>
    %551 = vector.broadcast %550 : f32 to vector<2x16xf32>
    %552 = arith.mulf %551, %501 : vector<2x16xf32>
    %553 = arith.addf %537, %552 : vector<2x16xf32>
    %c34_70 = arith.constant 34 : index
    %554 = memref.load %arg6[%c34_70] : memref<96xf32, #tpu.memory_space<smem>>
    %555 = vector.broadcast %554 : f32 to vector<2x16xf32>
    %556 = arith.mulf %555, %501 : vector<2x16xf32>
    %557 = arith.addf %541, %556 : vector<2x16xf32>
    %c35_71 = arith.constant 35 : index
    %558 = memref.load %arg6[%c35_71] : memref<96xf32, #tpu.memory_space<smem>>
    %559 = vector.broadcast %558 : f32 to vector<2x16xf32>
    %560 = arith.mulf %559, %501 : vector<2x16xf32>
    %561 = arith.addf %545, %560 : vector<2x16xf32>
    %c64_72 = arith.constant 64 : index
    %562 = memref.load %arg6[%c64_72] : memref<96xf32, #tpu.memory_space<smem>>
    %563 = vector.broadcast %562 : f32 to vector<2x16xf32>
    %564 = arith.mulf %563, %529 : vector<2x16xf32>
    %565 = arith.addf %549, %564 : vector<2x16xf32>
    %c65_73 = arith.constant 65 : index
    %566 = memref.load %arg6[%c65_73] : memref<96xf32, #tpu.memory_space<smem>>
    %567 = vector.broadcast %566 : f32 to vector<2x16xf32>
    %568 = arith.mulf %567, %529 : vector<2x16xf32>
    %569 = arith.addf %553, %568 : vector<2x16xf32>
    %c66_74 = arith.constant 66 : index
    %570 = memref.load %arg6[%c66_74] : memref<96xf32, #tpu.memory_space<smem>>
    %571 = vector.broadcast %570 : f32 to vector<2x16xf32>
    %572 = arith.mulf %571, %529 : vector<2x16xf32>
    %573 = arith.addf %557, %572 : vector<2x16xf32>
    %c67_75 = arith.constant 67 : index
    %574 = memref.load %arg6[%c67_75] : memref<96xf32, #tpu.memory_space<smem>>
    %575 = vector.broadcast %574 : f32 to vector<2x16xf32>
    %576 = arith.mulf %575, %529 : vector<2x16xf32>
    %577 = arith.addf %561, %576 : vector<2x16xf32>
    %c1_i32_76 = arith.constant 1 : i32
    %578 = tpu.dynamic_rotate %503 by %c1_i32_76 dim 1 : vector<2x16xf32>, i32 -> vector<2x16xf32>
    %cst_77 = arith.constant 0.000000e+00 : f32
    %579 = vector.broadcast %cst_77 : f32 to vector<2x16xf32>
    %580 = arith.select %3, %578, %579 : vector<2x16xi1>, vector<2x16xf32>
    %c15_i32_78 = arith.constant 15 : i32
    %581 = tpu.dynamic_rotate %503 by %c15_i32_78 dim 1 : vector<2x16xf32>, i32 -> vector<2x16xf32>
    %cst_79 = arith.constant 0.000000e+00 : f32
    %582 = vector.broadcast %cst_79 : f32 to vector<2x16xf32>
    %583 = arith.select %5, %581, %582 : vector<2x16xi1>, vector<2x16xf32>
    %c4_80 = arith.constant 4 : index
    %584 = memref.load %arg6[%c4_80] : memref<96xf32, #tpu.memory_space<smem>>
    %585 = vector.broadcast %584 : f32 to vector<2x16xf32>
    %586 = arith.mulf %585, %580 : vector<2x16xf32>
    %587 = arith.addf %565, %586 : vector<2x16xf32>
    %c5_81 = arith.constant 5 : index
    %588 = memref.load %arg6[%c5_81] : memref<96xf32, #tpu.memory_space<smem>>
    %589 = vector.broadcast %588 : f32 to vector<2x16xf32>
    %590 = arith.mulf %589, %580 : vector<2x16xf32>
    %591 = arith.addf %569, %590 : vector<2x16xf32>
    %c6_82 = arith.constant 6 : index
    %592 = memref.load %arg6[%c6_82] : memref<96xf32, #tpu.memory_space<smem>>
    %593 = vector.broadcast %592 : f32 to vector<2x16xf32>
    %594 = arith.mulf %593, %580 : vector<2x16xf32>
    %595 = arith.addf %573, %594 : vector<2x16xf32>
    %c7_83 = arith.constant 7 : index
    %596 = memref.load %arg6[%c7_83] : memref<96xf32, #tpu.memory_space<smem>>
    %597 = vector.broadcast %596 : f32 to vector<2x16xf32>
    %598 = arith.mulf %597, %580 : vector<2x16xf32>
    %599 = arith.addf %577, %598 : vector<2x16xf32>
    %c36_84 = arith.constant 36 : index
    %600 = memref.load %arg6[%c36_84] : memref<96xf32, #tpu.memory_space<smem>>
    %601 = vector.broadcast %600 : f32 to vector<2x16xf32>
    %602 = arith.mulf %601, %503 : vector<2x16xf32>
    %603 = arith.addf %587, %602 : vector<2x16xf32>
    %c37_85 = arith.constant 37 : index
    %604 = memref.load %arg6[%c37_85] : memref<96xf32, #tpu.memory_space<smem>>
    %605 = vector.broadcast %604 : f32 to vector<2x16xf32>
    %606 = arith.mulf %605, %503 : vector<2x16xf32>
    %607 = arith.addf %591, %606 : vector<2x16xf32>
    %c38_86 = arith.constant 38 : index
    %608 = memref.load %arg6[%c38_86] : memref<96xf32, #tpu.memory_space<smem>>
    %609 = vector.broadcast %608 : f32 to vector<2x16xf32>
    %610 = arith.mulf %609, %503 : vector<2x16xf32>
    %611 = arith.addf %595, %610 : vector<2x16xf32>
    %c39_87 = arith.constant 39 : index
    %612 = memref.load %arg6[%c39_87] : memref<96xf32, #tpu.memory_space<smem>>
    %613 = vector.broadcast %612 : f32 to vector<2x16xf32>
    %614 = arith.mulf %613, %503 : vector<2x16xf32>
    %615 = arith.addf %599, %614 : vector<2x16xf32>
    %c68_88 = arith.constant 68 : index
    %616 = memref.load %arg6[%c68_88] : memref<96xf32, #tpu.memory_space<smem>>
    %617 = vector.broadcast %616 : f32 to vector<2x16xf32>
    %618 = arith.mulf %617, %583 : vector<2x16xf32>
    %619 = arith.addf %603, %618 : vector<2x16xf32>
    %c69_89 = arith.constant 69 : index
    %620 = memref.load %arg6[%c69_89] : memref<96xf32, #tpu.memory_space<smem>>
    %621 = vector.broadcast %620 : f32 to vector<2x16xf32>
    %622 = arith.mulf %621, %583 : vector<2x16xf32>
    %623 = arith.addf %607, %622 : vector<2x16xf32>
    %c70_90 = arith.constant 70 : index
    %624 = memref.load %arg6[%c70_90] : memref<96xf32, #tpu.memory_space<smem>>
    %625 = vector.broadcast %624 : f32 to vector<2x16xf32>
    %626 = arith.mulf %625, %583 : vector<2x16xf32>
    %627 = arith.addf %611, %626 : vector<2x16xf32>
    %c71_91 = arith.constant 71 : index
    %628 = memref.load %arg6[%c71_91] : memref<96xf32, #tpu.memory_space<smem>>
    %629 = vector.broadcast %628 : f32 to vector<2x16xf32>
    %630 = arith.mulf %629, %583 : vector<2x16xf32>
    %631 = arith.addf %615, %630 : vector<2x16xf32>
    %c1_i32_92 = arith.constant 1 : i32
    %632 = tpu.dynamic_rotate %505 by %c1_i32_92 dim 1 : vector<2x16xf32>, i32 -> vector<2x16xf32>
    %cst_93 = arith.constant 0.000000e+00 : f32
    %633 = vector.broadcast %cst_93 : f32 to vector<2x16xf32>
    %634 = arith.select %3, %632, %633 : vector<2x16xi1>, vector<2x16xf32>
    %c15_i32_94 = arith.constant 15 : i32
    %635 = tpu.dynamic_rotate %505 by %c15_i32_94 dim 1 : vector<2x16xf32>, i32 -> vector<2x16xf32>
    %cst_95 = arith.constant 0.000000e+00 : f32
    %636 = vector.broadcast %cst_95 : f32 to vector<2x16xf32>
    %637 = arith.select %5, %635, %636 : vector<2x16xi1>, vector<2x16xf32>
    %c8_96 = arith.constant 8 : index
    %638 = memref.load %arg6[%c8_96] : memref<96xf32, #tpu.memory_space<smem>>
    %639 = vector.broadcast %638 : f32 to vector<2x16xf32>
    %640 = arith.mulf %639, %634 : vector<2x16xf32>
    %641 = arith.addf %619, %640 : vector<2x16xf32>
    %c9_97 = arith.constant 9 : index
    %642 = memref.load %arg6[%c9_97] : memref<96xf32, #tpu.memory_space<smem>>
    %643 = vector.broadcast %642 : f32 to vector<2x16xf32>
    %644 = arith.mulf %643, %634 : vector<2x16xf32>
    %645 = arith.addf %623, %644 : vector<2x16xf32>
    %c10_98 = arith.constant 10 : index
    %646 = memref.load %arg6[%c10_98] : memref<96xf32, #tpu.memory_space<smem>>
    %647 = vector.broadcast %646 : f32 to vector<2x16xf32>
    %648 = arith.mulf %647, %634 : vector<2x16xf32>
    %649 = arith.addf %627, %648 : vector<2x16xf32>
    %c11_99 = arith.constant 11 : index
    %650 = memref.load %arg6[%c11_99] : memref<96xf32, #tpu.memory_space<smem>>
    %651 = vector.broadcast %650 : f32 to vector<2x16xf32>
    %652 = arith.mulf %651, %634 : vector<2x16xf32>
    %653 = arith.addf %631, %652 : vector<2x16xf32>
    %c40_100 = arith.constant 40 : index
    %654 = memref.load %arg6[%c40_100] : memref<96xf32, #tpu.memory_space<smem>>
    %655 = vector.broadcast %654 : f32 to vector<2x16xf32>
    %656 = arith.mulf %655, %505 : vector<2x16xf32>
    %657 = arith.addf %641, %656 : vector<2x16xf32>
    %c41_101 = arith.constant 41 : index
    %658 = memref.load %arg6[%c41_101] : memref<96xf32, #tpu.memory_space<smem>>
    %659 = vector.broadcast %658 : f32 to vector<2x16xf32>
    %660 = arith.mulf %659, %505 : vector<2x16xf32>
    %661 = arith.addf %645, %660 : vector<2x16xf32>
    %c42_102 = arith.constant 42 : index
    %662 = memref.load %arg6[%c42_102] : memref<96xf32, #tpu.memory_space<smem>>
    %663 = vector.broadcast %662 : f32 to vector<2x16xf32>
    %664 = arith.mulf %663, %505 : vector<2x16xf32>
    %665 = arith.addf %649, %664 : vector<2x16xf32>
    %c43_103 = arith.constant 43 : index
    %666 = memref.load %arg6[%c43_103] : memref<96xf32, #tpu.memory_space<smem>>
    %667 = vector.broadcast %666 : f32 to vector<2x16xf32>
    %668 = arith.mulf %667, %505 : vector<2x16xf32>
    %669 = arith.addf %653, %668 : vector<2x16xf32>
    %c72_104 = arith.constant 72 : index
    %670 = memref.load %arg6[%c72_104] : memref<96xf32, #tpu.memory_space<smem>>
    %671 = vector.broadcast %670 : f32 to vector<2x16xf32>
    %672 = arith.mulf %671, %637 : vector<2x16xf32>
    %673 = arith.addf %657, %672 : vector<2x16xf32>
    %c73_105 = arith.constant 73 : index
    %674 = memref.load %arg6[%c73_105] : memref<96xf32, #tpu.memory_space<smem>>
    %675 = vector.broadcast %674 : f32 to vector<2x16xf32>
    %676 = arith.mulf %675, %637 : vector<2x16xf32>
    %677 = arith.addf %661, %676 : vector<2x16xf32>
    %c74_106 = arith.constant 74 : index
    %678 = memref.load %arg6[%c74_106] : memref<96xf32, #tpu.memory_space<smem>>
    %679 = vector.broadcast %678 : f32 to vector<2x16xf32>
    %680 = arith.mulf %679, %637 : vector<2x16xf32>
    %681 = arith.addf %665, %680 : vector<2x16xf32>
    %c75_107 = arith.constant 75 : index
    %682 = memref.load %arg6[%c75_107] : memref<96xf32, #tpu.memory_space<smem>>
    %683 = vector.broadcast %682 : f32 to vector<2x16xf32>
    %684 = arith.mulf %683, %637 : vector<2x16xf32>
    %685 = arith.addf %669, %684 : vector<2x16xf32>
    %c1_i32_108 = arith.constant 1 : i32
    %686 = tpu.dynamic_rotate %507 by %c1_i32_108 dim 1 : vector<2x16xf32>, i32 -> vector<2x16xf32>
    %cst_109 = arith.constant 0.000000e+00 : f32
    %687 = vector.broadcast %cst_109 : f32 to vector<2x16xf32>
    %688 = arith.select %3, %686, %687 : vector<2x16xi1>, vector<2x16xf32>
    %c15_i32_110 = arith.constant 15 : i32
    %689 = tpu.dynamic_rotate %507 by %c15_i32_110 dim 1 : vector<2x16xf32>, i32 -> vector<2x16xf32>
    %cst_111 = arith.constant 0.000000e+00 : f32
    %690 = vector.broadcast %cst_111 : f32 to vector<2x16xf32>
    %691 = arith.select %5, %689, %690 : vector<2x16xi1>, vector<2x16xf32>
    %c12_112 = arith.constant 12 : index
    %692 = memref.load %arg6[%c12_112] : memref<96xf32, #tpu.memory_space<smem>>
    %693 = vector.broadcast %692 : f32 to vector<2x16xf32>
    %694 = arith.mulf %693, %688 : vector<2x16xf32>
    %695 = arith.addf %673, %694 : vector<2x16xf32>
    %c13_113 = arith.constant 13 : index
    %696 = memref.load %arg6[%c13_113] : memref<96xf32, #tpu.memory_space<smem>>
    %697 = vector.broadcast %696 : f32 to vector<2x16xf32>
    %698 = arith.mulf %697, %688 : vector<2x16xf32>
    %699 = arith.addf %677, %698 : vector<2x16xf32>
    %c14_114 = arith.constant 14 : index
    %700 = memref.load %arg6[%c14_114] : memref<96xf32, #tpu.memory_space<smem>>
    %701 = vector.broadcast %700 : f32 to vector<2x16xf32>
    %702 = arith.mulf %701, %688 : vector<2x16xf32>
    %703 = arith.addf %681, %702 : vector<2x16xf32>
    %c15_115 = arith.constant 15 : index
    %704 = memref.load %arg6[%c15_115] : memref<96xf32, #tpu.memory_space<smem>>
    %705 = vector.broadcast %704 : f32 to vector<2x16xf32>
    %706 = arith.mulf %705, %688 : vector<2x16xf32>
    %707 = arith.addf %685, %706 : vector<2x16xf32>
    %c44_116 = arith.constant 44 : index
    %708 = memref.load %arg6[%c44_116] : memref<96xf32, #tpu.memory_space<smem>>
    %709 = vector.broadcast %708 : f32 to vector<2x16xf32>
    %710 = arith.mulf %709, %507 : vector<2x16xf32>
    %711 = arith.addf %695, %710 : vector<2x16xf32>
    %c45_117 = arith.constant 45 : index
    %712 = memref.load %arg6[%c45_117] : memref<96xf32, #tpu.memory_space<smem>>
    %713 = vector.broadcast %712 : f32 to vector<2x16xf32>
    %714 = arith.mulf %713, %507 : vector<2x16xf32>
    %715 = arith.addf %699, %714 : vector<2x16xf32>
    %c46_118 = arith.constant 46 : index
    %716 = memref.load %arg6[%c46_118] : memref<96xf32, #tpu.memory_space<smem>>
    %717 = vector.broadcast %716 : f32 to vector<2x16xf32>
    %718 = arith.mulf %717, %507 : vector<2x16xf32>
    %719 = arith.addf %703, %718 : vector<2x16xf32>
    %c47_119 = arith.constant 47 : index
    %720 = memref.load %arg6[%c47_119] : memref<96xf32, #tpu.memory_space<smem>>
    %721 = vector.broadcast %720 : f32 to vector<2x16xf32>
    %722 = arith.mulf %721, %507 : vector<2x16xf32>
    %723 = arith.addf %707, %722 : vector<2x16xf32>
    %c76_120 = arith.constant 76 : index
    %724 = memref.load %arg6[%c76_120] : memref<96xf32, #tpu.memory_space<smem>>
    %725 = vector.broadcast %724 : f32 to vector<2x16xf32>
    %726 = arith.mulf %725, %691 : vector<2x16xf32>
    %727 = arith.addf %711, %726 : vector<2x16xf32>
    %c77_121 = arith.constant 77 : index
    %728 = memref.load %arg6[%c77_121] : memref<96xf32, #tpu.memory_space<smem>>
    %729 = vector.broadcast %728 : f32 to vector<2x16xf32>
    %730 = arith.mulf %729, %691 : vector<2x16xf32>
    %731 = arith.addf %715, %730 : vector<2x16xf32>
    %c78_122 = arith.constant 78 : index
    %732 = memref.load %arg6[%c78_122] : memref<96xf32, #tpu.memory_space<smem>>
    %733 = vector.broadcast %732 : f32 to vector<2x16xf32>
    %734 = arith.mulf %733, %691 : vector<2x16xf32>
    %735 = arith.addf %719, %734 : vector<2x16xf32>
    %c79_123 = arith.constant 79 : index
    %736 = memref.load %arg6[%c79_123] : memref<96xf32, #tpu.memory_space<smem>>
    %737 = vector.broadcast %736 : f32 to vector<2x16xf32>
    %738 = arith.mulf %737, %691 : vector<2x16xf32>
    %739 = arith.addf %723, %738 : vector<2x16xf32>
    %c1_i32_124 = arith.constant 1 : i32
    %740 = tpu.dynamic_rotate %509 by %c1_i32_124 dim 1 : vector<2x16xf32>, i32 -> vector<2x16xf32>
    %cst_125 = arith.constant 0.000000e+00 : f32
    %741 = vector.broadcast %cst_125 : f32 to vector<2x16xf32>
    %742 = arith.select %3, %740, %741 : vector<2x16xi1>, vector<2x16xf32>
    %c15_i32_126 = arith.constant 15 : i32
    %743 = tpu.dynamic_rotate %509 by %c15_i32_126 dim 1 : vector<2x16xf32>, i32 -> vector<2x16xf32>
    %cst_127 = arith.constant 0.000000e+00 : f32
    %744 = vector.broadcast %cst_127 : f32 to vector<2x16xf32>
    %745 = arith.select %5, %743, %744 : vector<2x16xi1>, vector<2x16xf32>
    %c16_128 = arith.constant 16 : index
    %746 = memref.load %arg6[%c16_128] : memref<96xf32, #tpu.memory_space<smem>>
    %747 = vector.broadcast %746 : f32 to vector<2x16xf32>
    %748 = arith.mulf %747, %742 : vector<2x16xf32>
    %749 = arith.addf %727, %748 : vector<2x16xf32>
    %c17_129 = arith.constant 17 : index
    %750 = memref.load %arg6[%c17_129] : memref<96xf32, #tpu.memory_space<smem>>
    %751 = vector.broadcast %750 : f32 to vector<2x16xf32>
    %752 = arith.mulf %751, %742 : vector<2x16xf32>
    %753 = arith.addf %731, %752 : vector<2x16xf32>
    %c18_130 = arith.constant 18 : index
    %754 = memref.load %arg6[%c18_130] : memref<96xf32, #tpu.memory_space<smem>>
    %755 = vector.broadcast %754 : f32 to vector<2x16xf32>
    %756 = arith.mulf %755, %742 : vector<2x16xf32>
    %757 = arith.addf %735, %756 : vector<2x16xf32>
    %c19_131 = arith.constant 19 : index
    %758 = memref.load %arg6[%c19_131] : memref<96xf32, #tpu.memory_space<smem>>
    %759 = vector.broadcast %758 : f32 to vector<2x16xf32>
    %760 = arith.mulf %759, %742 : vector<2x16xf32>
    %761 = arith.addf %739, %760 : vector<2x16xf32>
    %c48_132 = arith.constant 48 : index
    %762 = memref.load %arg6[%c48_132] : memref<96xf32, #tpu.memory_space<smem>>
    %763 = vector.broadcast %762 : f32 to vector<2x16xf32>
    %764 = arith.mulf %763, %509 : vector<2x16xf32>
    %765 = arith.addf %749, %764 : vector<2x16xf32>
    %c49_133 = arith.constant 49 : index
    %766 = memref.load %arg6[%c49_133] : memref<96xf32, #tpu.memory_space<smem>>
    %767 = vector.broadcast %766 : f32 to vector<2x16xf32>
    %768 = arith.mulf %767, %509 : vector<2x16xf32>
    %769 = arith.addf %753, %768 : vector<2x16xf32>
    %c50_134 = arith.constant 50 : index
    %770 = memref.load %arg6[%c50_134] : memref<96xf32, #tpu.memory_space<smem>>
    %771 = vector.broadcast %770 : f32 to vector<2x16xf32>
    %772 = arith.mulf %771, %509 : vector<2x16xf32>
    %773 = arith.addf %757, %772 : vector<2x16xf32>
    %c51_135 = arith.constant 51 : index
    %774 = memref.load %arg6[%c51_135] : memref<96xf32, #tpu.memory_space<smem>>
    %775 = vector.broadcast %774 : f32 to vector<2x16xf32>
    %776 = arith.mulf %775, %509 : vector<2x16xf32>
    %777 = arith.addf %761, %776 : vector<2x16xf32>
    %c80_136 = arith.constant 80 : index
    %778 = memref.load %arg6[%c80_136] : memref<96xf32, #tpu.memory_space<smem>>
    %779 = vector.broadcast %778 : f32 to vector<2x16xf32>
    %780 = arith.mulf %779, %745 : vector<2x16xf32>
    %781 = arith.addf %765, %780 : vector<2x16xf32>
    %c81_137 = arith.constant 81 : index
    %782 = memref.load %arg6[%c81_137] : memref<96xf32, #tpu.memory_space<smem>>
    %783 = vector.broadcast %782 : f32 to vector<2x16xf32>
    %784 = arith.mulf %783, %745 : vector<2x16xf32>
    %785 = arith.addf %769, %784 : vector<2x16xf32>
    %c82_138 = arith.constant 82 : index
    %786 = memref.load %arg6[%c82_138] : memref<96xf32, #tpu.memory_space<smem>>
    %787 = vector.broadcast %786 : f32 to vector<2x16xf32>
    %788 = arith.mulf %787, %745 : vector<2x16xf32>
    %789 = arith.addf %773, %788 : vector<2x16xf32>
    %c83_139 = arith.constant 83 : index
    %790 = memref.load %arg6[%c83_139] : memref<96xf32, #tpu.memory_space<smem>>
    %791 = vector.broadcast %790 : f32 to vector<2x16xf32>
    %792 = arith.mulf %791, %745 : vector<2x16xf32>
    %793 = arith.addf %777, %792 : vector<2x16xf32>
    %c1_i32_140 = arith.constant 1 : i32
    %794 = tpu.dynamic_rotate %511 by %c1_i32_140 dim 1 : vector<2x16xf32>, i32 -> vector<2x16xf32>
    %cst_141 = arith.constant 0.000000e+00 : f32
    %795 = vector.broadcast %cst_141 : f32 to vector<2x16xf32>
    %796 = arith.select %3, %794, %795 : vector<2x16xi1>, vector<2x16xf32>
    %c15_i32_142 = arith.constant 15 : i32
    %797 = tpu.dynamic_rotate %511 by %c15_i32_142 dim 1 : vector<2x16xf32>, i32 -> vector<2x16xf32>
    %cst_143 = arith.constant 0.000000e+00 : f32
    %798 = vector.broadcast %cst_143 : f32 to vector<2x16xf32>
    %799 = arith.select %5, %797, %798 : vector<2x16xi1>, vector<2x16xf32>
    %c20_144 = arith.constant 20 : index
    %800 = memref.load %arg6[%c20_144] : memref<96xf32, #tpu.memory_space<smem>>
    %801 = vector.broadcast %800 : f32 to vector<2x16xf32>
    %802 = arith.mulf %801, %796 : vector<2x16xf32>
    %803 = arith.addf %781, %802 : vector<2x16xf32>
    %c21_145 = arith.constant 21 : index
    %804 = memref.load %arg6[%c21_145] : memref<96xf32, #tpu.memory_space<smem>>
    %805 = vector.broadcast %804 : f32 to vector<2x16xf32>
    %806 = arith.mulf %805, %796 : vector<2x16xf32>
    %807 = arith.addf %785, %806 : vector<2x16xf32>
    %c22_146 = arith.constant 22 : index
    %808 = memref.load %arg6[%c22_146] : memref<96xf32, #tpu.memory_space<smem>>
    %809 = vector.broadcast %808 : f32 to vector<2x16xf32>
    %810 = arith.mulf %809, %796 : vector<2x16xf32>
    %811 = arith.addf %789, %810 : vector<2x16xf32>
    %c23_147 = arith.constant 23 : index
    %812 = memref.load %arg6[%c23_147] : memref<96xf32, #tpu.memory_space<smem>>
    %813 = vector.broadcast %812 : f32 to vector<2x16xf32>
    %814 = arith.mulf %813, %796 : vector<2x16xf32>
    %815 = arith.addf %793, %814 : vector<2x16xf32>
    %c52_148 = arith.constant 52 : index
    %816 = memref.load %arg6[%c52_148] : memref<96xf32, #tpu.memory_space<smem>>
    %817 = vector.broadcast %816 : f32 to vector<2x16xf32>
    %818 = arith.mulf %817, %511 : vector<2x16xf32>
    %819 = arith.addf %803, %818 : vector<2x16xf32>
    %c53_149 = arith.constant 53 : index
    %820 = memref.load %arg6[%c53_149] : memref<96xf32, #tpu.memory_space<smem>>
    %821 = vector.broadcast %820 : f32 to vector<2x16xf32>
    %822 = arith.mulf %821, %511 : vector<2x16xf32>
    %823 = arith.addf %807, %822 : vector<2x16xf32>
    %c54_150 = arith.constant 54 : index
    %824 = memref.load %arg6[%c54_150] : memref<96xf32, #tpu.memory_space<smem>>
    %825 = vector.broadcast %824 : f32 to vector<2x16xf32>
    %826 = arith.mulf %825, %511 : vector<2x16xf32>
    %827 = arith.addf %811, %826 : vector<2x16xf32>
    %c55_151 = arith.constant 55 : index
    %828 = memref.load %arg6[%c55_151] : memref<96xf32, #tpu.memory_space<smem>>
    %829 = vector.broadcast %828 : f32 to vector<2x16xf32>
    %830 = arith.mulf %829, %511 : vector<2x16xf32>
    %831 = arith.addf %815, %830 : vector<2x16xf32>
    %c84_152 = arith.constant 84 : index
    %832 = memref.load %arg6[%c84_152] : memref<96xf32, #tpu.memory_space<smem>>
    %833 = vector.broadcast %832 : f32 to vector<2x16xf32>
    %834 = arith.mulf %833, %799 : vector<2x16xf32>
    %835 = arith.addf %819, %834 : vector<2x16xf32>
    %c85_153 = arith.constant 85 : index
    %836 = memref.load %arg6[%c85_153] : memref<96xf32, #tpu.memory_space<smem>>
    %837 = vector.broadcast %836 : f32 to vector<2x16xf32>
    %838 = arith.mulf %837, %799 : vector<2x16xf32>
    %839 = arith.addf %823, %838 : vector<2x16xf32>
    %c86_154 = arith.constant 86 : index
    %840 = memref.load %arg6[%c86_154] : memref<96xf32, #tpu.memory_space<smem>>
    %841 = vector.broadcast %840 : f32 to vector<2x16xf32>
    %842 = arith.mulf %841, %799 : vector<2x16xf32>
    %843 = arith.addf %827, %842 : vector<2x16xf32>
    %c87_155 = arith.constant 87 : index
    %844 = memref.load %arg6[%c87_155] : memref<96xf32, #tpu.memory_space<smem>>
    %845 = vector.broadcast %844 : f32 to vector<2x16xf32>
    %846 = arith.mulf %845, %799 : vector<2x16xf32>
    %847 = arith.addf %831, %846 : vector<2x16xf32>
    %c1_i32_156 = arith.constant 1 : i32
    %848 = tpu.dynamic_rotate %513 by %c1_i32_156 dim 1 : vector<2x16xf32>, i32 -> vector<2x16xf32>
    %cst_157 = arith.constant 0.000000e+00 : f32
    %849 = vector.broadcast %cst_157 : f32 to vector<2x16xf32>
    %850 = arith.select %3, %848, %849 : vector<2x16xi1>, vector<2x16xf32>
    %c15_i32_158 = arith.constant 15 : i32
    %851 = tpu.dynamic_rotate %513 by %c15_i32_158 dim 1 : vector<2x16xf32>, i32 -> vector<2x16xf32>
    %cst_159 = arith.constant 0.000000e+00 : f32
    %852 = vector.broadcast %cst_159 : f32 to vector<2x16xf32>
    %853 = arith.select %5, %851, %852 : vector<2x16xi1>, vector<2x16xf32>
    %c24_160 = arith.constant 24 : index
    %854 = memref.load %arg6[%c24_160] : memref<96xf32, #tpu.memory_space<smem>>
    %855 = vector.broadcast %854 : f32 to vector<2x16xf32>
    %856 = arith.mulf %855, %850 : vector<2x16xf32>
    %857 = arith.addf %835, %856 : vector<2x16xf32>
    %c25_161 = arith.constant 25 : index
    %858 = memref.load %arg6[%c25_161] : memref<96xf32, #tpu.memory_space<smem>>
    %859 = vector.broadcast %858 : f32 to vector<2x16xf32>
    %860 = arith.mulf %859, %850 : vector<2x16xf32>
    %861 = arith.addf %839, %860 : vector<2x16xf32>
    %c26_162 = arith.constant 26 : index
    %862 = memref.load %arg6[%c26_162] : memref<96xf32, #tpu.memory_space<smem>>
    %863 = vector.broadcast %862 : f32 to vector<2x16xf32>
    %864 = arith.mulf %863, %850 : vector<2x16xf32>
    %865 = arith.addf %843, %864 : vector<2x16xf32>
    %c27_163 = arith.constant 27 : index
    %866 = memref.load %arg6[%c27_163] : memref<96xf32, #tpu.memory_space<smem>>
    %867 = vector.broadcast %866 : f32 to vector<2x16xf32>
    %868 = arith.mulf %867, %850 : vector<2x16xf32>
    %869 = arith.addf %847, %868 : vector<2x16xf32>
    %c56_164 = arith.constant 56 : index
    %870 = memref.load %arg6[%c56_164] : memref<96xf32, #tpu.memory_space<smem>>
    %871 = vector.broadcast %870 : f32 to vector<2x16xf32>
    %872 = arith.mulf %871, %513 : vector<2x16xf32>
    %873 = arith.addf %857, %872 : vector<2x16xf32>
    %c57_165 = arith.constant 57 : index
    %874 = memref.load %arg6[%c57_165] : memref<96xf32, #tpu.memory_space<smem>>
    %875 = vector.broadcast %874 : f32 to vector<2x16xf32>
    %876 = arith.mulf %875, %513 : vector<2x16xf32>
    %877 = arith.addf %861, %876 : vector<2x16xf32>
    %c58_166 = arith.constant 58 : index
    %878 = memref.load %arg6[%c58_166] : memref<96xf32, #tpu.memory_space<smem>>
    %879 = vector.broadcast %878 : f32 to vector<2x16xf32>
    %880 = arith.mulf %879, %513 : vector<2x16xf32>
    %881 = arith.addf %865, %880 : vector<2x16xf32>
    %c59_167 = arith.constant 59 : index
    %882 = memref.load %arg6[%c59_167] : memref<96xf32, #tpu.memory_space<smem>>
    %883 = vector.broadcast %882 : f32 to vector<2x16xf32>
    %884 = arith.mulf %883, %513 : vector<2x16xf32>
    %885 = arith.addf %869, %884 : vector<2x16xf32>
    %c88_168 = arith.constant 88 : index
    %886 = memref.load %arg6[%c88_168] : memref<96xf32, #tpu.memory_space<smem>>
    %887 = vector.broadcast %886 : f32 to vector<2x16xf32>
    %888 = arith.mulf %887, %853 : vector<2x16xf32>
    %889 = arith.addf %873, %888 : vector<2x16xf32>
    %c89_169 = arith.constant 89 : index
    %890 = memref.load %arg6[%c89_169] : memref<96xf32, #tpu.memory_space<smem>>
    %891 = vector.broadcast %890 : f32 to vector<2x16xf32>
    %892 = arith.mulf %891, %853 : vector<2x16xf32>
    %893 = arith.addf %877, %892 : vector<2x16xf32>
    %c90_170 = arith.constant 90 : index
    %894 = memref.load %arg6[%c90_170] : memref<96xf32, #tpu.memory_space<smem>>
    %895 = vector.broadcast %894 : f32 to vector<2x16xf32>
    %896 = arith.mulf %895, %853 : vector<2x16xf32>
    %897 = arith.addf %881, %896 : vector<2x16xf32>
    %c91_171 = arith.constant 91 : index
    %898 = memref.load %arg6[%c91_171] : memref<96xf32, #tpu.memory_space<smem>>
    %899 = vector.broadcast %898 : f32 to vector<2x16xf32>
    %900 = arith.mulf %899, %853 : vector<2x16xf32>
    %901 = arith.addf %885, %900 : vector<2x16xf32>
    %c1_i32_172 = arith.constant 1 : i32
    %902 = tpu.dynamic_rotate %515 by %c1_i32_172 dim 1 : vector<2x16xf32>, i32 -> vector<2x16xf32>
    %cst_173 = arith.constant 0.000000e+00 : f32
    %903 = vector.broadcast %cst_173 : f32 to vector<2x16xf32>
    %904 = arith.select %3, %902, %903 : vector<2x16xi1>, vector<2x16xf32>
    %c15_i32_174 = arith.constant 15 : i32
    %905 = tpu.dynamic_rotate %515 by %c15_i32_174 dim 1 : vector<2x16xf32>, i32 -> vector<2x16xf32>
    %cst_175 = arith.constant 0.000000e+00 : f32
    %906 = vector.broadcast %cst_175 : f32 to vector<2x16xf32>
    %907 = arith.select %5, %905, %906 : vector<2x16xi1>, vector<2x16xf32>
    %c28_176 = arith.constant 28 : index
    %908 = memref.load %arg6[%c28_176] : memref<96xf32, #tpu.memory_space<smem>>
    %909 = vector.broadcast %908 : f32 to vector<2x16xf32>
    %910 = arith.mulf %909, %904 : vector<2x16xf32>
    %911 = arith.addf %889, %910 : vector<2x16xf32>
    %c29_177 = arith.constant 29 : index
    %912 = memref.load %arg6[%c29_177] : memref<96xf32, #tpu.memory_space<smem>>
    %913 = vector.broadcast %912 : f32 to vector<2x16xf32>
    %914 = arith.mulf %913, %904 : vector<2x16xf32>
    %915 = arith.addf %893, %914 : vector<2x16xf32>
    %c30_178 = arith.constant 30 : index
    %916 = memref.load %arg6[%c30_178] : memref<96xf32, #tpu.memory_space<smem>>
    %917 = vector.broadcast %916 : f32 to vector<2x16xf32>
    %918 = arith.mulf %917, %904 : vector<2x16xf32>
    %919 = arith.addf %897, %918 : vector<2x16xf32>
    %c31_179 = arith.constant 31 : index
    %920 = memref.load %arg6[%c31_179] : memref<96xf32, #tpu.memory_space<smem>>
    %921 = vector.broadcast %920 : f32 to vector<2x16xf32>
    %922 = arith.mulf %921, %904 : vector<2x16xf32>
    %923 = arith.addf %901, %922 : vector<2x16xf32>
    %c60_180 = arith.constant 60 : index
    %924 = memref.load %arg6[%c60_180] : memref<96xf32, #tpu.memory_space<smem>>
    %925 = vector.broadcast %924 : f32 to vector<2x16xf32>
    %926 = arith.mulf %925, %515 : vector<2x16xf32>
    %927 = arith.addf %911, %926 : vector<2x16xf32>
    %c61_181 = arith.constant 61 : index
    %928 = memref.load %arg6[%c61_181] : memref<96xf32, #tpu.memory_space<smem>>
    %929 = vector.broadcast %928 : f32 to vector<2x16xf32>
    %930 = arith.mulf %929, %515 : vector<2x16xf32>
    %931 = arith.addf %915, %930 : vector<2x16xf32>
    %c62_182 = arith.constant 62 : index
    %932 = memref.load %arg6[%c62_182] : memref<96xf32, #tpu.memory_space<smem>>
    %933 = vector.broadcast %932 : f32 to vector<2x16xf32>
    %934 = arith.mulf %933, %515 : vector<2x16xf32>
    %935 = arith.addf %919, %934 : vector<2x16xf32>
    %c63_183 = arith.constant 63 : index
    %936 = memref.load %arg6[%c63_183] : memref<96xf32, #tpu.memory_space<smem>>
    %937 = vector.broadcast %936 : f32 to vector<2x16xf32>
    %938 = arith.mulf %937, %515 : vector<2x16xf32>
    %939 = arith.addf %923, %938 : vector<2x16xf32>
    %c92_184 = arith.constant 92 : index
    %940 = memref.load %arg6[%c92_184] : memref<96xf32, #tpu.memory_space<smem>>
    %941 = vector.broadcast %940 : f32 to vector<2x16xf32>
    %942 = arith.mulf %941, %907 : vector<2x16xf32>
    %943 = arith.addf %927, %942 : vector<2x16xf32>
    %c93_185 = arith.constant 93 : index
    %944 = memref.load %arg6[%c93_185] : memref<96xf32, #tpu.memory_space<smem>>
    %945 = vector.broadcast %944 : f32 to vector<2x16xf32>
    %946 = arith.mulf %945, %907 : vector<2x16xf32>
    %947 = arith.addf %931, %946 : vector<2x16xf32>
    %c94_186 = arith.constant 94 : index
    %948 = memref.load %arg6[%c94_186] : memref<96xf32, #tpu.memory_space<smem>>
    %949 = vector.broadcast %948 : f32 to vector<2x16xf32>
    %950 = arith.mulf %949, %907 : vector<2x16xf32>
    %951 = arith.addf %935, %950 : vector<2x16xf32>
    %c95_187 = arith.constant 95 : index
    %952 = memref.load %arg6[%c95_187] : memref<96xf32, #tpu.memory_space<smem>>
    %953 = vector.broadcast %952 : f32 to vector<2x16xf32>
    %954 = arith.mulf %953, %907 : vector<2x16xf32>
    %955 = arith.addf %939, %954 : vector<2x16xf32>
    %cst_188 = arith.constant 0.000000e+00 : f32
    %956 = vector.broadcast %cst_188 : f32 to vector<2x16xf32>
    %957 = arith.maximumf %943, %956 : vector<2x16xf32>
    %cst_189 = arith.constant 0.000000e+00 : f32
    %958 = vector.broadcast %cst_189 : f32 to vector<2x16xf32>
    %959 = arith.maximumf %947, %958 : vector<2x16xf32>
    %cst_190 = arith.constant 0.000000e+00 : f32
    %960 = vector.broadcast %cst_190 : f32 to vector<2x16xf32>
    %961 = arith.maximumf %951, %960 : vector<2x16xf32>
    %cst_191 = arith.constant 0.000000e+00 : f32
    %962 = vector.broadcast %cst_191 : f32 to vector<2x16xf32>
    %963 = arith.maximumf %955, %962 : vector<2x16xf32>
    %cst_192 = arith.constant dense<0.000000e+00> : vector<2xf32>
    %964 = vector.multi_reduction <add>, %957, %cst_192 [1] : vector<2x16xf32> to vector<2xf32>
    %965 = vector.shape_cast %964 : vector<2xf32> to vector<2x1xf32>
    %cst_193 = arith.constant 6.250000e-02 : f32
    %966 = vector.broadcast %cst_193 : f32 to vector<2x1xf32>
    %967 = arith.mulf %965, %966 : vector<2x1xf32>
    %cst_194 = arith.constant dense<0.000000e+00> : vector<2xf32>
    %968 = vector.multi_reduction <add>, %959, %cst_194 [1] : vector<2x16xf32> to vector<2xf32>
    %969 = vector.shape_cast %968 : vector<2xf32> to vector<2x1xf32>
    %cst_195 = arith.constant 6.250000e-02 : f32
    %970 = vector.broadcast %cst_195 : f32 to vector<2x1xf32>
    %971 = arith.mulf %969, %970 : vector<2x1xf32>
    %cst_196 = arith.constant dense<0.000000e+00> : vector<2xf32>
    %972 = vector.multi_reduction <add>, %961, %cst_196 [1] : vector<2x16xf32> to vector<2xf32>
    %973 = vector.shape_cast %972 : vector<2xf32> to vector<2x1xf32>
    %cst_197 = arith.constant 6.250000e-02 : f32
    %974 = vector.broadcast %cst_197 : f32 to vector<2x1xf32>
    %975 = arith.mulf %973, %974 : vector<2x1xf32>
    %cst_198 = arith.constant dense<0.000000e+00> : vector<2xf32>
    %976 = vector.multi_reduction <add>, %963, %cst_198 [1] : vector<2x16xf32> to vector<2xf32>
    %977 = vector.shape_cast %976 : vector<2xf32> to vector<2x1xf32>
    %cst_199 = arith.constant 6.250000e-02 : f32
    %978 = vector.broadcast %cst_199 : f32 to vector<2x1xf32>
    %979 = arith.mulf %977, %978 : vector<2x1xf32>
    %980 = tpu.concatenate %967, %971, %975, %979 in 1 : vector<2x1xf32>, vector<2x1xf32>, vector<2x1xf32>, vector<2x1xf32> -> vector<2x4xf32>
    %c0_200 = arith.constant 0 : index
    %c0_201 = arith.constant 0 : index
    %981 = vector.load %arg8[%c0_200, %c0_201] : memref<2x4xf32, #tpu.memory_space<vmem>>, vector<2x4xf32>
    tpu.vector_store %arg8[%c0_200, %c0_201], %980 {strides = array<i32>} : memref<2x4xf32, #tpu.memory_space<vmem>>, vector<2x4xf32>,
    return
  }
  func.func @transform_0(%arg0: i32) -> (i32, i32) {
    %c0_i32 = arith.constant 0 : i32
    %c0_i32_0 = arith.constant 0 : i32
    return %arg0, %c0_i32 : i32, i32
  }
  func.func @transform_1(%arg0: i32) -> i32 {
    %c0_i32 = arith.constant 0 : i32
    %c0_i32_0 = arith.constant 0 : i32
    return %c0_i32 : i32
  }
  func.func @transform_2(%arg0: i32) -> i32 {
    %c0_i32 = arith.constant 0 : i32
    %c0_i32_0 = arith.constant 0 : i32
    return %c0_i32 : i32
  }
  func.func @transform_3(%arg0: i32) -> i32 {
    %c0_i32 = arith.constant 0 : i32
    %c0_i32_0 = arith.constant 0 : i32
    return %c0_i32 : i32
  }
  func.func @transform_4(%arg0: i32) -> i32 {
    %c0_i32 = arith.constant 0 : i32
    %c0_i32_0 = arith.constant 0 : i32
    return %c0_i32 : i32
  }
  func.func @transform_5(%arg0: i32) -> i32 {
    %c0_i32 = arith.constant 0 : i32
    %c0_i32_0 = arith.constant 0 : i32
    return %c0_i32 : i32
  }
  func.func @transform_6(%arg0: i32) -> i32 {
    %c0_i32 = arith.constant 0 : i32
    %c0_i32_0 = arith.constant 0 : i32
    return %c0_i32 : i32
  }
  func.func @transform_7(%arg0: i32) -> (i32, i32) {
    %c0_i32 = arith.constant 0 : i32
    %c0_i32_0 = arith.constant 0 : i32
    return %arg0, %c0_i32 : i32, i32
  }
}

</mosaic_0001>

<llo_original>
// kernel: tpu_custom_call.1
$region0: #{tpu_custom_call.1}
  #allocation0 [shape = 'u32[]', space=smem, size = 0x4, offset = 0x4, fixed_abs, tag = 'smem constant byte address 0x4 - core index']
  #allocation1 [shape = 'u32[144,128]{1,0:T(1,128)}', space=vmem, size = 0x12000, scoped, tag = 'internal scratch']
  %s0 = inlined_call_operand.hbm [shape: f32[2,16], index: 0, kind: input, shape index: {}]
  %s1 = inlined_call_operand.vmem [shape: f32[12], index: 1, kind: input, shape index: {}]
  %s2 = inlined_call_operand.vmem [shape: f32[4], index: 2, kind: input, shape index: {}]
  %s3 = inlined_call_operand.vmem [shape: f32[96], index: 3, kind: input, shape index: {}]
  %s4 = inlined_call_operand.vmem [shape: f32[8], index: 4, kind: input, shape index: {}]
  %s5 = inlined_call_operand.vmem [shape: f32[96], index: 5, kind: input, shape index: {}]
  %s6 = inlined_call_operand.vmem [shape: f32[4], index: 6, kind: input, shape index: {}]
  %s7 = inlined_call_operand.hbm [shape: f32[2,4], index: 7, kind: output, shape index: {}]
  %s8 = sld [smem:[#allocation0]]
  $region66: #{tpu_custom_call.1} parent=0
    _
  %s10 = ssub.s32 1, %s8
  %s11 = scalar_select 0, %s10, %s8
  $region1: #{tpu_custom_call.1} parent=0
    #allocation2 [shape = 'u8[1024]{0}', space=vmem, size = 0x400, scoped, tag = 'input window, operand 0, single buffered']
    #allocation3 [shape = 's32[1]{0}', space=sflag, size = 0x4, scoped, tag = 'scoped memory for tpu_custom_call.1']
    #allocation4 [shape = 's32[1]{0}', space=sflag, size = 0x4, scoped, tag = 'scoped memory for tpu_custom_call.1']
    #allocation5 [shape = 's32[1]{0}', space=sflag, size = 0x4, scoped, tag = 'scoped memory for tpu_custom_call.1']
    #allocation6 [shape = 'u8[512]{0}', space=smem, size = 0x200, scoped, tag = 'input window, operand 1, single buffered']
    #allocation7 [shape = 'u8[512]{0}', space=smem, size = 0x200, scoped, tag = 'input window, operand 2, single buffered']
    #allocation8 [shape = 's32[1]{0}', space=sflag, size = 0x4, scoped, tag = 'scoped memory for tpu_custom_call.1']
    #allocation9 [shape = 'u8[512]{0}', space=smem, size = 0x200, scoped, tag = 'input window, operand 3, single buffered']
    #allocation10 [shape = 'u8[512]{0}', space=smem, size = 0x200, scoped, tag = 'input window, operand 4, single buffered']
    #allocation11 [shape = 's32[1]{0}', space=sflag, size = 0x4, scoped, tag = 'scoped memory for tpu_custom_call.1']
    #allocation12 [shape = 'u8[512]{0}', space=smem, size = 0x200, scoped, tag = 'input window, operand 5, single buffered']
    #allocation13 [shape = 'u8[512]{0}', space=smem, size = 0x200, scoped, tag = 'input window, operand 6, single buffered']
    #allocation14 [shape = 's32[1]{0}', space=sflag, size = 0x4, scoped, tag = 'scoped memory for tpu_custom_call.1']
    #allocation15 [shape = 'u8[1024]{0}', space=vmem, size = 0x400, scoped, tag = 'output window, operand 0, single buffered']
    %12 = vsyncpa [#allocation3], 0
    %13 = vsyncpa [#allocation5], 0
    %14 = vsyncpa [#allocation8], 0
    %15 = vsyncpa [#allocation11], 0
    %16 = vsyncpa [#allocation14], 0
    %17 = vsyncpa [#allocation4], 0
    // Predicated region
    $region2: #{tpu_custom_call.1} parent=1 // pred_check
      _
    $region3: #{tpu_custom_call.1} parent=1 // pred_check_branch
      %19 = sbr.rel (0) target = $region5
    $region4: #{tpu_custom_call.1} parent=1 // pred_region
      %s21 = ssub.s32 32, 32
      %22 = vsyncadd [#allocation3], %s21
      %s24 = sshll.u32 [#allocation2], 4
      %s25 = int_to_ptr.vmem [resolvable:$true] %s24
      %27 = dma.hbm_to_vmem [thread:$0]  %s0, 32, %s25, [#allocation3]
    $region5: #{tpu_custom_call.1} parent=1 // pred_fallthru
      _
    // Predicated region
    $region6: #{tpu_custom_call.1} parent=1 // pred_check
      _
    $region7: #{tpu_custom_call.1} parent=1 // pred_check_branch
      %29 = sbr.rel (0) target = $region9
    $region8: #{tpu_custom_call.1} parent=1 // pred_region
      %s31 = ssub.s32 16, 16
      %32 = vsyncadd [#allocation5], %s31
      %s34 = sshll.u32 %s1, 4
      %s35 = int_to_ptr.vmem [resolvable:$true] %s34
      %37 = dma.vmem_to_smem %s35, 16, [#allocation6], [#allocation5]
    $region9: #{tpu_custom_call.1} parent=1 // pred_fallthru
      _
    // Predicated region
    $region10: #{tpu_custom_call.1} parent=1 // pred_check
      _
    $region11: #{tpu_custom_call.1} parent=1 // pred_check_branch
      %39 = sbr.rel (0) target = $region13
    $region12: #{tpu_custom_call.1} parent=1 // pred_region
      %s41 = ssub.s32 16, 16
      %42 = vsyncadd [#allocation8], %s41
      %s44 = sshll.u32 %s2, 4
      %s45 = int_to_ptr.vmem [resolvable:$true] %s44
      %47 = dma.vmem_to_smem %s45, 16, [#allocation7], [#allocation8]
    $region13: #{tpu_custom_call.1} parent=1 // pred_fallthru
      _
    // Predicated region
    $region14: #{tpu_custom_call.1} parent=1 // pred_check
      _
    $region15: #{tpu_custom_call.1} parent=1 // pred_check_branch
      %49 = sbr.rel (0) target = $region17
    $region16: #{tpu_custom_call.1} parent=1 // pred_region
      %s51 = ssub.s32 16, 16
      %52 = vsyncadd [#allocation8], %s51
      %s54 = sshll.u32 %s3, 4
      %s55 = int_to_ptr.vmem [resolvable:$true] %s54
      %57 = dma.vmem_to_smem %s55, 16, [#allocation9], [#allocation8]
    $region17: #{tpu_custom_call.1} parent=1 // pred_fallthru
      _
    // Predicated region
    $region18: #{tpu_custom_call.1} parent=1 // pred_check
      _
    $region19: #{tpu_custom_call.1} parent=1 // pred_check_branch
      %59 = sbr.rel (0) target = $region21
    $region20: #{tpu_custom_call.1} parent=1 // pred_region
      %s61 = ssub.s32 16, 16
      %62 = vsyncadd [#allocation11], %s61
      %s64 = sshll.u32 %s4, 4
      %s65 = int_to_ptr.vmem [resolvable:$true] %s64
      %67 = dma.vmem_to_smem %s65, 16, [#allocation10], [#allocation11]
    $region21: #{tpu_custom_call.1} parent=1 // pred_fallthru
      _
    // Predicated region
    $region22: #{tpu_custom_call.1} parent=1 // pred_check
      _
    $region23: #{tpu_custom_call.1} parent=1 // pred_check_branch
      %69 = sbr.rel (0) target = $region25
    $region24: #{tpu_custom_call.1} parent=1 // pred_region
      %s71 = ssub.s32 16, 16
      %72 = vsyncadd [#allocation11], %s71
      %s74 = sshll.u32 %s5, 4
      %s75 = int_to_ptr.vmem [resolvable:$true] %s74
      %77 = dma.vmem_to_smem %s75, 16, [#allocation12], [#allocation11]
    $region25: #{tpu_custom_call.1} parent=1 // pred_fallthru
      _
    // Predicated region
    $region26: #{tpu_custom_call.1} parent=1 // pred_check
      _
    $region27: #{tpu_custom_call.1} parent=1 // pred_check_branch
      %79 = sbr.rel (0) target = $region29
    $region28: #{tpu_custom_call.1} parent=1 // pred_region
      %s81 = ssub.s32 16, 16
      %82 = vsyncadd [#allocation14], %s81
      %s84 = sshll.u32 %s6, 4
      %s85 = int_to_ptr.vmem [resolvable:$true] %s84
      %87 = dma.vmem_to_smem %s85, 16, [#allocation13], [#allocation14]
    $region29: #{tpu_custom_call.1} parent=1 // pred_fallthru
      _
    // Predicated region
    $region30: #{tpu_custom_call.1} parent=1 // pred_check
      _
    $region31: #{tpu_custom_call.1} parent=1 // pred_check_branch
      %89 = sbr.rel (0) target = $region33
    $region32: #{tpu_custom_call.1} parent=1 // pred_region
      %90 = dma.done [#allocation3], 32
    $region33: #{tpu_custom_call.1} parent=1 // pred_fallthru
      _
    // Predicated region
    $region34: #{tpu_custom_call.1} parent=1 // pred_check
      _
    $region35: #{tpu_custom_call.1} parent=1 // pred_check_branch
      %92 = sbr.rel (0) target = $region37
    $region36: #{tpu_custom_call.1} parent=1 // pred_region
      %93 = dma.done [#allocation5], 16
    $region37: #{tpu_custom_call.1} parent=1 // pred_fallthru
      _
    // Predicated region
    $region38: #{tpu_custom_call.1} parent=1 // pred_check
      _
    $region39: #{tpu_custom_call.1} parent=1 // pred_check_branch
      %95 = sbr.rel (0) target = $region41
    $region40: #{tpu_custom_call.1} parent=1 // pred_region
      %96 = dma.done [#allocation8], 16
    $region41: #{tpu_custom_call.1} parent=1 // pred_fallthru
      _
    // Predicated region
    $region42: #{tpu_custom_call.1} parent=1 // pred_check
      _
    $region43: #{tpu_custom_call.1} parent=1 // pred_check_branch
      %98 = sbr.rel (0) target = $region45
    $region44: #{tpu_custom_call.1} parent=1 // pred_region
      %99 = dma.done [#allocation8], 16
    $region45: #{tpu_custom_call.1} parent=1 // pred_fallthru
      _
    // Predicated region
    $region46: #{tpu_custom_call.1} parent=1 // pred_check
      _
    $region47: #{tpu_custom_call.1} parent=1 // pred_check_branch
      %101 = sbr.rel (0) target = $region49
    $region48: #{tpu_custom_call.1} parent=1 // pred_region
      %102 = dma.done [#allocation11], 16
    $region49: #{tpu_custom_call.1} parent=1 // pred_fallthru
      _
    // Predicated region
    $region50: #{tpu_custom_call.1} parent=1 // pred_check
      _
    $region51: #{tpu_custom_call.1} parent=1 // pred_check_branch
      %104 = sbr.rel (0) target = $region53
    $region52: #{tpu_custom_call.1} parent=1 // pred_region
      %105 = dma.done [#allocation11], 16
    $region53: #{tpu_custom_call.1} parent=1 // pred_fallthru
      _
    // Predicated region
    $region54: #{tpu_custom_call.1} parent=1 // pred_check
      _
    $region55: #{tpu_custom_call.1} parent=1 // pred_check_branch
      %107 = sbr.rel (0) target = $region57
    $region56: #{tpu_custom_call.1} parent=1 // pred_region
      %108 = dma.done [#allocation14], 16
    $region57: #{tpu_custom_call.1} parent=1 // pred_fallthru
      _
    %109 = sfence
    %v110 = vld [vmem:[#allocation2] sm:$0x3]
    %v111 = vlaneseq
    %v112 = vand.u32 %v111, 127
    %vm113 = vcmp.ge.s32.totalorder %v112, 1
    %vm114 = vcmp.le.s32.totalorder %v112, 14
    %s115 = sld [smem:[#allocation7]]
    %v116 = vstv %s115
    %s117 = sld [smem:[#allocation7 + $0x1]]
    %v118 = vstv %s117
    %s119 = sld [smem:[#allocation7 + $0x2]]
    %v120 = vstv %s119
    %s121 = sld [smem:[#allocation7 + $0x3]]
    %v122 = vstv %s121
    %vm123 = vcmask 1047680
    %124 = vrot.lane.b32.xlu0 %v110, 16
    %v125 = vpop.permute.xlu0 %124
    %v126 = vsel %vm123, %v125, %v110
    %127 = vrot.lane.b32.xlu0 %v126, 16
    %v128 = vpop.permute.xlu0 %127
    %v129 = vsel %vm123, %v128, %v110
    %131 = vrot.lane.b32.xlu0 %v129, 113
    %v132 = vpop.permute.xlu0 %131
    %v134 = vsel %vm113, %v132, 0.0
    %135 = vrot.lane.b32.xlu0 %v129, 127
    %v136 = vpop.permute.xlu0 %135
    %v138 = vsel %vm114, %v136, 0.0
    %s139 = sld [smem:[#allocation6]]
    %v140 = vstv %s139
    %v141 = vmul.f32 %v140, %v134
    %v142 = vadd.f32 %v116, %v141
    %s143 = sld [smem:[#allocation6 + $0x1]]
    %v144 = vstv %s143
    %v145 = vmul.f32 %v144, %v134
    %v146 = vadd.f32 %v118, %v145
    %s147 = sld [smem:[#allocation6 + $0x2]]
    %v148 = vstv %s147
    %v149 = vmul.f32 %v148, %v134
    %v150 = vadd.f32 %v120, %v149
    %s151 = sld [smem:[#allocation6 + $0x3]]
    %v152 = vstv %s151
    %v153 = vmul.f32 %v152, %v134
    %v154 = vadd.f32 %v122, %v153
    %s155 = sld [smem:[#allocation6 + $0x4]]
    %v156 = vstv %s155
    %v157 = vmul.f32 %v156, %v110
    %v158 = vadd.f32 %v142, %v157
    %s159 = sld [smem:[#allocation6 + $0x5]]
    %v160 = vstv %s159
    %v161 = vmul.f32 %v160, %v110
    %v162 = vadd.f32 %v146, %v161
    %s163 = sld [smem:[#allocation6 + $0x6]]
    %v164 = vstv %s163
    %v165 = vmul.f32 %v164, %v110
    %v166 = vadd.f32 %v150, %v165
    %s167 = sld [smem:[#allocation6 + $0x7]]
    %v168 = vstv %s167
    %v169 = vmul.f32 %v168, %v110
    %v170 = vadd.f32 %v154, %v169
    %s171 = sld [smem:[#allocation6 + $0x8]]
    %v172 = vstv %s171
    %v173 = vmul.f32 %v172, %v138
    %v174 = vadd.f32 %v158, %v173
    %s175 = sld [smem:[#allocation6 + $0x9]]
    %v176 = vstv %s175
    %v177 = vmul.f32 %v176, %v138
    %v178 = vadd.f32 %v162, %v177
    %s179 = sld [smem:[#allocation6 + $0xa]]
    %v180 = vstv %s179
    %v181 = vmul.f32 %v180, %v138
    %v182 = vadd.f32 %v166, %v181
    %s183 = sld [smem:[#allocation6 + $0xb]]
    %v184 = vstv %s183
    %v185 = vmul.f32 %v184, %v138
    %v186 = vadd.f32 %v170, %v185
    %v187 = vmax.f32 %v174, 0.0
    %v188 = vmax.f32 %v178, 0.0
    %v189 = vmax.f32 %v182, 0.0
    %v190 = vmax.f32 %v186, 0.0
    %s191 = sld [smem:[#allocation10]]
    %v192 = vstv %s191
    %s193 = sld [smem:[#allocation10 + $0x1]]
    %v194 = vstv %s193
    %s195 = sld [smem:[#allocation10 + $0x2]]
    %v196 = vstv %s195
    %s197 = sld [smem:[#allocation10 + $0x3]]
    %v198 = vstv %s197
    %s199 = sld [smem:[#allocation10 + $0x4]]
    %v200 = vstv %s199
    %s201 = sld [smem:[#allocation10 + $0x5]]
    %v202 = vstv %s201
    %s203 = sld [smem:[#allocation10 + $0x6]]
    %v204 = vstv %s203
    %s205 = sld [smem:[#allocation10 + $0x7]]
    %v206 = vstv %s205
    %207 = vrot.lane.b32.xlu0 %v187, 16
    %v208 = vpop.permute.xlu0 %207
    %v209 = vsel %vm123, %v208, %v187
    %210 = vrot.lane.b32.xlu0 %v209, 16
    %v211 = vpop.permute.xlu0 %210
    %v212 = vsel %vm123, %v211, %v187
    %214 = vrot.lane.b32.xlu0 %v212, 113
    %v215 = vpop.permute.xlu0 %214
    %v217 = vsel %vm113, %v215, 0.0
    %218 = vrot.lane.b32.xlu0 %v212, 127
    %v219 = vpop.permute.xlu0 %218
    %v221 = vsel %vm114, %v219, 0.0
    %s222 = sld [smem:[#allocation9]]
    %v223 = vstv %s222
    %v224 = vmul.f32 %v223, %v217
    %v225 = vadd.f32 %v192, %v224
    %s226 = sld [smem:[#allocation9 + $0x1]]
    %v227 = vstv %s226
    %v228 = vmul.f32 %v227, %v217
    %v229 = vadd.f32 %v194, %v228
    %s230 = sld [smem:[#allocation9 + $0x2]]
    %v231 = vstv %s230
    %v232 = vmul.f32 %v231, %v217
    %v233 = vadd.f32 %v196, %v232
    %s234 = sld [smem:[#allocation9 + $0x3]]
    %v235 = vstv %s234
    %v236 = vmul.f32 %v235, %v217
    %v237 = vadd.f32 %v198, %v236
    %s238 = sld [smem:[#allocation9 + $0x4]]
    %v239 = vstv %s238
    %v240 = vmul.f32 %v239, %v217
    %v241 = vadd.f32 %v200, %v240
    %s242 = sld [smem:[#allocation9 + $0x5]]
    %v243 = vstv %s242
    %v244 = vmul.f32 %v243, %v217
    %v245 = vadd.f32 %v202, %v244
    %s246 = sld [smem:[#allocation9 + $0x6]]
    %v247 = vstv %s246
    %v248 = vmul.f32 %v247, %v217
    %v249 = vadd.f32 %v204, %v248
    %s250 = sld [smem:[#allocation9 + $0x7]]
    %v251 = vstv %s250
    %v252 = vmul.f32 %v251, %v217
    %v253 = vadd.f32 %v206, %v252
    %s254 = sld [smem:[#allocation9 + $0x20]]
    %v255 = vstv %s254
    %v256 = vmul.f32 %v255, %v187
    %v257 = vadd.f32 %v225, %v256
    %s258 = sld [smem:[#allocation9 + $0x21]]
    %v259 = vstv %s258
    %v260 = vmul.f32 %v259, %v187
    %v261 = vadd.f32 %v229, %v260
    %s262 = sld [smem:[#allocation9 + $0x22]]
    %v263 = vstv %s262
    %v264 = vmul.f32 %v263, %v187
    %v265 = vadd.f32 %v233, %v264
    %s266 = sld [smem:[#allocation9 + $0x23]]
    %v267 = vstv %s266
    %v268 = vmul.f32 %v267, %v187
    %v269 = vadd.f32 %v237, %v268
    %s270 = sld [smem:[#allocation9 + $0x24]]
    %v271 = vstv %s270
    %v272 = vmul.f32 %v271, %v187
    %v273 = vadd.f32 %v241, %v272
    %s274 = sld [smem:[#allocation9 + $0x25]]
    %v275 = vstv %s274
    %v276 = vmul.f32 %v275, %v187
    %v277 = vadd.f32 %v245, %v276
    %s278 = sld [smem:[#allocation9 + $0x26]]
    %v279 = vstv %s278
    %v280 = vmul.f32 %v279, %v187
    %v281 = vadd.f32 %v249, %v280
    %s282 = sld [smem:[#allocation9 + $0x27]]
    %v283 = vstv %s282
    %v284 = vmul.f32 %v283, %v187
    %v285 = vadd.f32 %v253, %v284
    %s286 = sld [smem:[#allocation9 + $0x40]]
    %v287 = vstv %s286
    %v288 = vmul.f32 %v287, %v221
    %v289 = vadd.f32 %v257, %v288
    %s290 = sld [smem:[#allocation9 + $0x41]]
    %v291 = vstv %s290
    %v292 = vmul.f32 %v291, %v221
    %v293 = vadd.f32 %v261, %v292
    %s294 = sld [smem:[#allocation9 + $0x42]]
    %v295 = vstv %s294
    %v296 = vmul.f32 %v295, %v221
    %v297 = vadd.f32 %v265, %v296
    %s298 = sld [smem:[#allocation9 + $0x43]]
    %v299 = vstv %s298
    %v300 = vmul.f32 %v299, %v221
    %v301 = vadd.f32 %v269, %v300
    %s302 = sld [smem:[#allocation9 + $0x44]]
    %v303 = vstv %s302
    %v304 = vmul.f32 %v303, %v221
    %v305 = vadd.f32 %v273, %v304
    %s306 = sld [smem:[#allocation9 + $0x45]]
    %v307 = vstv %s306
    %v308 = vmul.f32 %v307, %v221
    %v309 = vadd.f32 %v277, %v308
    %s310 = sld [smem:[#allocation9 + $0x46]]
    %v311 = vstv %s310
    %v312 = vmul.f32 %v311, %v221
    %v313 = vadd.f32 %v281, %v312
    %s314 = sld [smem:[#allocation9 + $0x47]]
    %v315 = vstv %s314
    %v316 = vmul.f32 %v315, %v221
    %v317 = vadd.f32 %v285, %v316
    %318 = vrot.lane.b32.xlu0 %v188, 16
    %v319 = vpop.permute.xlu0 %318
    %v320 = vsel %vm123, %v319, %v188
    %321 = vrot.lane.b32.xlu0 %v320, 16
    %v322 = vpop.permute.xlu0 %321
    %v323 = vsel %vm123, %v322, %v188
    %325 = vrot.lane.b32.xlu0 %v323, 113
    %v326 = vpop.permute.xlu0 %325
    %v328 = vsel %vm113, %v326, 0.0
    %329 = vrot.lane.b32.xlu0 %v323, 127
    %v330 = vpop.permute.xlu0 %329
    %v332 = vsel %vm114, %v330, 0.0
    %s333 = sld [smem:[#allocation9 + $0x8]]
    %v334 = vstv %s333
    %v335 = vmul.f32 %v334, %v328
    %v336 = vadd.f32 %v289, %v335
    %s337 = sld [smem:[#allocation9 + $0x9]]
    %v338 = vstv %s337
    %v339 = vmul.f32 %v338, %v328
    %v340 = vadd.f32 %v293, %v339
    %s341 = sld [smem:[#allocation9 + $0xa]]
    %v342 = vstv %s341
    %v343 = vmul.f32 %v342, %v328
    %v344 = vadd.f32 %v297, %v343
    %s345 = sld [smem:[#allocation9 + $0xb]]
    %v346 = vstv %s345
    %v347 = vmul.f32 %v346, %v328
    %v348 = vadd.f32 %v301, %v347
    %s349 = sld [smem:[#allocation9 + $0xc]]
    %v350 = vstv %s349
    %v351 = vmul.f32 %v350, %v328
    %v352 = vadd.f32 %v305, %v351
    %s353 = sld [smem:[#allocation9 + $0xd]]
    %v354 = vstv %s353
    %v355 = vmul.f32 %v354, %v328
    %v356 = vadd.f32 %v309, %v355
    %s357 = sld [smem:[#allocation9 + $0xe]]
    %v358 = vstv %s357
    %v359 = vmul.f32 %v358, %v328
    %v360 = vadd.f32 %v313, %v359
    %s361 = sld [smem:[#allocation9 + $0xf]]
    %v362 = vstv %s361
    %v363 = vmul.f32 %v362, %v328
    %v364 = vadd.f32 %v317, %v363
    %s365 = sld [smem:[#allocation9 + $0x28]]
    %v366 = vstv %s365
    %v367 = vmul.f32 %v366, %v188
    %v368 = vadd.f32 %v336, %v367
    %s369 = sld [smem:[#allocation9 + $0x29]]
    %v370 = vstv %s369
    %v371 = vmul.f32 %v370, %v188
    %v372 = vadd.f32 %v340, %v371
    %s373 = sld [smem:[#allocation9 + $0x2a]]
    %v374 = vstv %s373
    %v375 = vmul.f32 %v374, %v188
    %v376 = vadd.f32 %v344, %v375
    %s377 = sld [smem:[#allocation9 + $0x2b]]
    %v378 = vstv %s377
    %v379 = vmul.f32 %v378, %v188
    %v380 = vadd.f32 %v348, %v379
    %s381 = sld [smem:[#allocation9 + $0x2c]]
    %v382 = vstv %s381
    %v383 = vmul.f32 %v382, %v188
    %v384 = vadd.f32 %v352, %v383
    %s385 = sld [smem:[#allocation9 + $0x2d]]
    %v386 = vstv %s385
    %v387 = vmul.f32 %v386, %v188
    %v388 = vadd.f32 %v356, %v387
    %s389 = sld [smem:[#allocation9 + $0x2e]]
    %v390 = vstv %s389
    %v391 = vmul.f32 %v390, %v188
    %v392 = vadd.f32 %v360, %v391
    %s393 = sld [smem:[#allocation9 + $0x2f]]
    %v394 = vstv %s393
    %v395 = vmul.f32 %v394, %v188
    %v396 = vadd.f32 %v364, %v395
    %s397 = sld [smem:[#allocation9 + $0x48]]
    %v398 = vstv %s397
    %v399 = vmul.f32 %v398, %v332
    %v400 = vadd.f32 %v368, %v399
    %s401 = sld [smem:[#allocation9 + $0x49]]
    %v402 = vstv %s401
    %v403 = vmul.f32 %v402, %v332
    %v404 = vadd.f32 %v372, %v403
    %s405 = sld [smem:[#allocation9 + $0x4a]]
    %v406 = vstv %s405
    %v407 = vmul.f32 %v406, %v332
    %v408 = vadd.f32 %v376, %v407
    %s409 = sld [smem:[#allocation9 + $0x4b]]
    %v410 = vstv %s409
    %v411 = vmul.f32 %v410, %v332
    %v412 = vadd.f32 %v380, %v411
    %s413 = sld [smem:[#allocation9 + $0x4c]]
    %v414 = vstv %s413
    %v415 = vmul.f32 %v414, %v332
    %v416 = vadd.f32 %v384, %v415
    %s417 = sld [smem:[#allocation9 + $0x4d]]
    %v418 = vstv %s417
    %v419 = vmul.f32 %v418, %v332
    %v420 = vadd.f32 %v388, %v419
    %s421 = sld [smem:[#allocation9 + $0x4e]]
    %v422 = vstv %s421
    %v423 = vmul.f32 %v422, %v332
    %v424 = vadd.f32 %v392, %v423
    %s425 = sld [smem:[#allocation9 + $0x4f]]
    %v426 = vstv %s425
    %v427 = vmul.f32 %v426, %v332
    %v428 = vadd.f32 %v396, %v427
    %429 = vrot.lane.b32.xlu0 %v189, 16
    %v430 = vpop.permute.xlu0 %429
    %v431 = vsel %vm123, %v430, %v189
    %432 = vrot.lane.b32.xlu0 %v431, 16
    %v433 = vpop.permute.xlu0 %432
    %v434 = vsel %vm123, %v433, %v189
    %436 = vrot.lane.b32.xlu0 %v434, 113
    %v437 = vpop.permute.xlu0 %436
    %v439 = vsel %vm113, %v437, 0.0
    %440 = vrot.lane.b32.xlu0 %v434, 127
    %v441 = vpop.permute.xlu0 %440
    %v443 = vsel %vm114, %v441, 0.0
    %s444 = sld [smem:[#allocation9 + $0x10]]
    %v445 = vstv %s444
    %v446 = vmul.f32 %v445, %v439
    %v447 = vadd.f32 %v400, %v446
    %s448 = sld [smem:[#allocation9 + $0x11]]
    %v449 = vstv %s448
    %v450 = vmul.f32 %v449, %v439
    %v451 = vadd.f32 %v404, %v450
    %s452 = sld [smem:[#allocation9 + $0x12]]
    %v453 = vstv %s452
    %v454 = vmul.f32 %v453, %v439
    %v455 = vadd.f32 %v408, %v454
    %s456 = sld [smem:[#allocation9 + $0x13]]
    %v457 = vstv %s456
    %v458 = vmul.f32 %v457, %v439
    %v459 = vadd.f32 %v412, %v458
    %s460 = sld [smem:[#allocation9 + $0x14]]
    %v461 = vstv %s460
    %v462 = vmul.f32 %v461, %v439
    %v463 = vadd.f32 %v416, %v462
    %s464 = sld [smem:[#allocation9 + $0x15]]
    %v465 = vstv %s464
    %v466 = vmul.f32 %v465, %v439
    %v467 = vadd.f32 %v420, %v466
    %s468 = sld [smem:[#allocation9 + $0x16]]
    %v469 = vstv %s468
    %v470 = vmul.f32 %v469, %v439
    %v471 = vadd.f32 %v424, %v470
    %s472 = sld [smem:[#allocation9 + $0x17]]
    %v473 = vstv %s472
    %v474 = vmul.f32 %v473, %v439
    %v475 = vadd.f32 %v428, %v474
    %s476 = sld [smem:[#allocation9 + $0x30]]
    %v477 = vstv %s476
    %v478 = vmul.f32 %v477, %v189
    %v479 = vadd.f32 %v447, %v478
    %s480 = sld [smem:[#allocation9 + $0x31]]
    %v481 = vstv %s480
    %v482 = vmul.f32 %v481, %v189
    %v483 = vadd.f32 %v451, %v482
    %s484 = sld [smem:[#allocation9 + $0x32]]
    %v485 = vstv %s484
    %v486 = vmul.f32 %v485, %v189
    %v487 = vadd.f32 %v455, %v486
    %s488 = sld [smem:[#allocation9 + $0x33]]
    %v489 = vstv %s488
    %v490 = vmul.f32 %v489, %v189
    %v491 = vadd.f32 %v459, %v490
    %s492 = sld [smem:[#allocation9 + $0x34]]
    %v493 = vstv %s492
    %v494 = vmul.f32 %v493, %v189
    %v495 = vadd.f32 %v463, %v494
    %s496 = sld [smem:[#allocation9 + $0x35]]
    %v497 = vstv %s496
    %v498 = vmul.f32 %v497, %v189
    %v499 = vadd.f32 %v467, %v498
    %s500 = sld [smem:[#allocation9 + $0x36]]
    %v501 = vstv %s500
    %v502 = vmul.f32 %v501, %v189
    %v503 = vadd.f32 %v471, %v502
    %s504 = sld [smem:[#allocation9 + $0x37]]
    %v505 = vstv %s504
    %v506 = vmul.f32 %v505, %v189
    %v507 = vadd.f32 %v475, %v506
    %s508 = sld [smem:[#allocation9 + $0x50]]
    %v509 = vstv %s508
    %v510 = vmul.f32 %v509, %v443
    %v511 = vadd.f32 %v479, %v510
    %s512 = sld [smem:[#allocation9 + $0x51]]
    %v513 = vstv %s512
    %v514 = vmul.f32 %v513, %v443
    %v515 = vadd.f32 %v483, %v514
    %s516 = sld [smem:[#allocation9 + $0x52]]
    %v517 = vstv %s516
    %v518 = vmul.f32 %v517, %v443
    %v519 = vadd.f32 %v487, %v518
    %s520 = sld [smem:[#allocation9 + $0x53]]
    %v521 = vstv %s520
    %v522 = vmul.f32 %v521, %v443
    %v523 = vadd.f32 %v491, %v522
    %s524 = sld [smem:[#allocation9 + $0x54]]
    %v525 = vstv %s524
    %v526 = vmul.f32 %v525, %v443
    %v527 = vadd.f32 %v495, %v526
    %s528 = sld [smem:[#allocation9 + $0x55]]
    %v529 = vstv %s528
    %v530 = vmul.f32 %v529, %v443
    %v531 = vadd.f32 %v499, %v530
    %s532 = sld [smem:[#allocation9 + $0x56]]
    %v533 = vstv %s532
    %v534 = vmul.f32 %v533, %v443
    %v535 = vadd.f32 %v503, %v534
    %s536 = sld [smem:[#allocation9 + $0x57]]
    %v537 = vstv %s536
    %v538 = vmul.f32 %v537, %v443
    %v539 = vadd.f32 %v507, %v538
    %540 = vrot.lane.b32.xlu0 %v190, 16
    %v541 = vpop.permute.xlu0 %540
    %v542 = vsel %vm123, %v541, %v190
    %543 = vrot.lane.b32.xlu0 %v542, 16
    %v544 = vpop.permute.xlu0 %543
    %v545 = vsel %vm123, %v544, %v190
    %547 = vrot.lane.b32.xlu0 %v545, 113
    %v548 = vpop.permute.xlu0 %547
    %v550 = vsel %vm113, %v548, 0.0
    %551 = vrot.lane.b32.xlu0 %v545, 127
    %v552 = vpop.permute.xlu0 %551
    %v554 = vsel %vm114, %v552, 0.0
    %s555 = sld [smem:[#allocation9 + $0x18]]
    %v556 = vstv %s555
    %v557 = vmul.f32 %v556, %v550
    %v558 = vadd.f32 %v511, %v557
    %s559 = sld [smem:[#allocation9 + $0x19]]
    %v560 = vstv %s559
    %v561 = vmul.f32 %v560, %v550
    %v562 = vadd.f32 %v515, %v561
    %s563 = sld [smem:[#allocation9 + $0x1a]]
    %v564 = vstv %s563
    %v565 = vmul.f32 %v564, %v550
    %v566 = vadd.f32 %v519, %v565
    %s567 = sld [smem:[#allocation9 + $0x1b]]
    %v568 = vstv %s567
    %v569 = vmul.f32 %v568, %v550
    %v570 = vadd.f32 %v523, %v569
    %s571 = sld [smem:[#allocation9 + $0x1c]]
    %v572 = vstv %s571
    %v573 = vmul.f32 %v572, %v550
    %v574 = vadd.f32 %v527, %v573
    %s575 = sld [smem:[#allocation9 + $0x1d]]
    %v576 = vstv %s575
    %v577 = vmul.f32 %v576, %v550
    %v578 = vadd.f32 %v531, %v577
    %s579 = sld [smem:[#allocation9 + $0x1e]]
    %v580 = vstv %s579
    %v581 = vmul.f32 %v580, %v550
    %v582 = vadd.f32 %v535, %v581
    %s583 = sld [smem:[#allocation9 + $0x1f]]
    %v584 = vstv %s583
    %v585 = vmul.f32 %v584, %v550
    %v586 = vadd.f32 %v539, %v585
    %s587 = sld [smem:[#allocation9 + $0x38]]
    %v588 = vstv %s587
    %v589 = vmul.f32 %v588, %v190
    %v590 = vadd.f32 %v558, %v589
    %s591 = sld [smem:[#allocation9 + $0x39]]
    %v592 = vstv %s591
    %v593 = vmul.f32 %v592, %v190
    %v594 = vadd.f32 %v562, %v593
    %s595 = sld [smem:[#allocation9 + $0x3a]]
    %v596 = vstv %s595
    %v597 = vmul.f32 %v596, %v190
    %v598 = vadd.f32 %v566, %v597
    %s599 = sld [smem:[#allocation9 + $0x3b]]
    %v600 = vstv %s599
    %v601 = vmul.f32 %v600, %v190
    %v602 = vadd.f32 %v570, %v601
    %s603 = sld [smem:[#allocation9 + $0x3c]]
    %v604 = vstv %s603
    %v605 = vmul.f32 %v604, %v190
    %v606 = vadd.f32 %v574, %v605
    %s607 = sld [smem:[#allocation9 + $0x3d]]
    %v608 = vstv %s607
    %v609 = vmul.f32 %v608, %v190
    %v610 = vadd.f32 %v578, %v609
    %s611 = sld [smem:[#allocation9 + $0x3e]]
    %v612 = vstv %s611
    %v613 = vmul.f32 %v612, %v190
    %v614 = vadd.f32 %v582, %v613
    %s615 = sld [smem:[#allocation9 + $0x3f]]
    %v616 = vstv %s615
    %v617 = vmul.f32 %v616, %v190
    %v618 = vadd.f32 %v586, %v617
    %s619 = sld [smem:[#allocation9 + $0x58]]
    %v620 = vstv %s619
    %v621 = vmul.f32 %v620, %v554
    %v622 = vadd.f32 %v590, %v621
    %s623 = sld [smem:[#allocation9 + $0x59]]
    %v624 = vstv %s623
    %v625 = vmul.f32 %v624, %v554
    %v626 = vadd.f32 %v594, %v625
    %s627 = sld [smem:[#allocation9 + $0x5a]]
    %v628 = vstv %s627
    %v629 = vmul.f32 %v628, %v554
    %v630 = vadd.f32 %v598, %v629
    %s631 = sld [smem:[#allocation9 + $0x5b]]
    %v632 = vstv %s631
    %v633 = vmul.f32 %v632, %v554
    %v634 = vadd.f32 %v602, %v633
    %s635 = sld [smem:[#allocation9 + $0x5c]]
    %v636 = vstv %s635
    %v637 = vmul.f32 %v636, %v554
    %v638 = vadd.f32 %v606, %v637
    %s639 = sld [smem:[#allocation9 + $0x5d]]
    %v640 = vstv %s639
    %v641 = vmul.f32 %v640, %v554
    %v642 = vadd.f32 %v610, %v641
    %s643 = sld [smem:[#allocation9 + $0x5e]]
    %v644 = vstv %s643
    %v645 = vmul.f32 %v644, %v554
    %v646 = vadd.f32 %v614, %v645
    %s647 = sld [smem:[#allocation9 + $0x5f]]
    %v648 = vstv %s647
    %v649 = vmul.f32 %v648, %v554
    %v650 = vadd.f32 %v618, %v649
    %v651 = vmax.f32 %v622, 0.0
    %v652 = vmax.f32 %v626, 0.0
    %v653 = vmax.f32 %v630, 0.0
    %v654 = vmax.f32 %v634, 0.0
    %v655 = vmax.f32 %v638, 0.0
    %v656 = vmax.f32 %v642, 0.0
    %v657 = vmax.f32 %v646, 0.0
    %v658 = vmax.f32 %v650, 0.0
    %s659 = sld [smem:[#allocation13]]
    %v660 = vstv %s659
    %s661 = sld [smem:[#allocation13 + $0x1]]
    %v662 = vstv %s661
    %s663 = sld [smem:[#allocation13 + $0x2]]
    %v664 = vstv %s663
    %s665 = sld [smem:[#allocation13 + $0x3]]
    %v666 = vstv %s665
    %667 = vrot.lane.b32.xlu0 %v651, 16
    %v668 = vpop.permute.xlu0 %667
    %v669 = vsel %vm123, %v668, %v651
    %670 = vrot.lane.b32.xlu0 %v669, 16
    %v671 = vpop.permute.xlu0 %670
    %v672 = vsel %vm123, %v671, %v651
    %674 = vrot.lane.b32.xlu0 %v672, 113
    %v675 = vpop.permute.xlu0 %674
    %v677 = vsel %vm113, %v675, 0.0
    %678 = vrot.lane.b32.xlu0 %v672, 127
    %v679 = vpop.permute.xlu0 %678
    %v681 = vsel %vm114, %v679, 0.0
    %s682 = sld [smem:[#allocation12]]
    %v683 = vstv %s682
    %v684 = vmul.f32 %v683, %v677
    %v685 = vadd.f32 %v660, %v684
    %s686 = sld [smem:[#allocation12 + $0x1]]
    %v687 = vstv %s686
    %v688 = vmul.f32 %v687, %v677
    %v689 = vadd.f32 %v662, %v688
    %s690 = sld [smem:[#allocation12 + $0x2]]
    %v691 = vstv %s690
    %v692 = vmul.f32 %v691, %v677
    %v693 = vadd.f32 %v664, %v692
    %s694 = sld [smem:[#allocation12 + $0x3]]
    %v695 = vstv %s694
    %v696 = vmul.f32 %v695, %v677
    %v697 = vadd.f32 %v666, %v696
    %s698 = sld [smem:[#allocation12 + $0x20]]
    %v699 = vstv %s698
    %v700 = vmul.f32 %v699, %v651
    %v701 = vadd.f32 %v685, %v700
    %s702 = sld [smem:[#allocation12 + $0x21]]
    %v703 = vstv %s702
    %v704 = vmul.f32 %v703, %v651
    %v705 = vadd.f32 %v689, %v704
    %s706 = sld [smem:[#allocation12 + $0x22]]
    %v707 = vstv %s706
    %v708 = vmul.f32 %v707, %v651
    %v709 = vadd.f32 %v693, %v708
    %s710 = sld [smem:[#allocation12 + $0x23]]
    %v711 = vstv %s710
    %v712 = vmul.f32 %v711, %v651
    %v713 = vadd.f32 %v697, %v712
    %s714 = sld [smem:[#allocation12 + $0x40]]
    %v715 = vstv %s714
    %v716 = vmul.f32 %v715, %v681
    %v717 = vadd.f32 %v701, %v716
    %s718 = sld [smem:[#allocation12 + $0x41]]
    %v719 = vstv %s718
    %v720 = vmul.f32 %v719, %v681
    %v721 = vadd.f32 %v705, %v720
    %s722 = sld [smem:[#allocation12 + $0x42]]
    %v723 = vstv %s722
    %v724 = vmul.f32 %v723, %v681
    %v725 = vadd.f32 %v709, %v724
    %s726 = sld [smem:[#allocation12 + $0x43]]
    %v727 = vstv %s726
    %v728 = vmul.f32 %v727, %v681
    %v729 = vadd.f32 %v713, %v728
    %730 = vrot.lane.b32.xlu0 %v652, 16
    %v731 = vpop.permute.xlu0 %730
    %v732 = vsel %vm123, %v731, %v652
    %733 = vrot.lane.b32.xlu0 %v732, 16
    %v734 = vpop.permute.xlu0 %733
    %v735 = vsel %vm123, %v734, %v652
    %737 = vrot.lane.b32.xlu0 %v735, 113
    %v738 = vpop.permute.xlu0 %737
    %v740 = vsel %vm113, %v738, 0.0
    %741 = vrot.lane.b32.xlu0 %v735, 127
    %v742 = vpop.permute.xlu0 %741
    %v744 = vsel %vm114, %v742, 0.0
    %s745 = sld [smem:[#allocation12 + $0x4]]
    %v746 = vstv %s745
    %v747 = vmul.f32 %v746, %v740
    %v748 = vadd.f32 %v717, %v747
    %s749 = sld [smem:[#allocation12 + $0x5]]
    %v750 = vstv %s749
    %v751 = vmul.f32 %v750, %v740
    %v752 = vadd.f32 %v721, %v751
    %s753 = sld [smem:[#allocation12 + $0x6]]
    %v754 = vstv %s753
    %v755 = vmul.f32 %v754, %v740
    %v756 = vadd.f32 %v725, %v755
    %s757 = sld [smem:[#allocation12 + $0x7]]
    %v758 = vstv %s757
    %v759 = vmul.f32 %v758, %v740
    %v760 = vadd.f32 %v729, %v759
    %s761 = sld [smem:[#allocation12 + $0x24]]
    %v762 = vstv %s761
    %v763 = vmul.f32 %v762, %v652
    %v764 = vadd.f32 %v748, %v763
    %s765 = sld [smem:[#allocation12 + $0x25]]
    %v766 = vstv %s765
    %v767 = vmul.f32 %v766, %v652
    %v768 = vadd.f32 %v752, %v767
    %s769 = sld [smem:[#allocation12 + $0x26]]
    %v770 = vstv %s769
    %v771 = vmul.f32 %v770, %v652
    %v772 = vadd.f32 %v756, %v771
    %s773 = sld [smem:[#allocation12 + $0x27]]
    %v774 = vstv %s773
    %v775 = vmul.f32 %v774, %v652
    %v776 = vadd.f32 %v760, %v775
    %s777 = sld [smem:[#allocation12 + $0x44]]
    %v778 = vstv %s777
    %v779 = vmul.f32 %v778, %v744
    %v780 = vadd.f32 %v764, %v779
    %s781 = sld [smem:[#allocation12 + $0x45]]
    %v782 = vstv %s781
    %v783 = vmul.f32 %v782, %v744
    %v784 = vadd.f32 %v768, %v783
    %s785 = sld [smem:[#allocation12 + $0x46]]
    %v786 = vstv %s785
    %v787 = vmul.f32 %v786, %v744
    %v788 = vadd.f32 %v772, %v787
    %s789 = sld [smem:[#allocation12 + $0x47]]
    %v790 = vstv %s789
    %v791 = vmul.f32 %v790, %v744
    %v792 = vadd.f32 %v776, %v791
    %793 = vrot.lane.b32.xlu0 %v653, 16
    %v794 = vpop.permute.xlu0 %793
    %v795 = vsel %vm123, %v794, %v653
    %796 = vrot.lane.b32.xlu0 %v795, 16
    %v797 = vpop.permute.xlu0 %796
    %v798 = vsel %vm123, %v797, %v653
    %800 = vrot.lane.b32.xlu0 %v798, 113
    %v801 = vpop.permute.xlu0 %800
    %v803 = vsel %vm113, %v801, 0.0
    %804 = vrot.lane.b32.xlu0 %v798, 127
    %v805 = vpop.permute.xlu0 %804
    %v807 = vsel %vm114, %v805, 0.0
    %s808 = sld [smem:[#allocation12 + $0x8]]
    %v809 = vstv %s808
    %v810 = vmul.f32 %v809, %v803
    %v811 = vadd.f32 %v780, %v810
    %s812 = sld [smem:[#allocation12 + $0x9]]
    %v813 = vstv %s812
    %v814 = vmul.f32 %v813, %v803
    %v815 = vadd.f32 %v784, %v814
    %s816 = sld [smem:[#allocation12 + $0xa]]
    %v817 = vstv %s816
    %v818 = vmul.f32 %v817, %v803
    %v819 = vadd.f32 %v788, %v818
    %s820 = sld [smem:[#allocation12 + $0xb]]
    %v821 = vstv %s820
    %v822 = vmul.f32 %v821, %v803
    %v823 = vadd.f32 %v792, %v822
    %s824 = sld [smem:[#allocation12 + $0x28]]
    %v825 = vstv %s824
    %v826 = vmul.f32 %v825, %v653
    %v827 = vadd.f32 %v811, %v826
    %s828 = sld [smem:[#allocation12 + $0x29]]
    %v829 = vstv %s828
    %v830 = vmul.f32 %v829, %v653
    %v831 = vadd.f32 %v815, %v830
    %s832 = sld [smem:[#allocation12 + $0x2a]]
    %v833 = vstv %s832
    %v834 = vmul.f32 %v833, %v653
    %v835 = vadd.f32 %v819, %v834
    %s836 = sld [smem:[#allocation12 + $0x2b]]
    %v837 = vstv %s836
    %v838 = vmul.f32 %v837, %v653
    %v839 = vadd.f32 %v823, %v838
    %s840 = sld [smem:[#allocation12 + $0x48]]
    %v841 = vstv %s840
    %v842 = vmul.f32 %v841, %v807
    %v843 = vadd.f32 %v827, %v842
    %s844 = sld [smem:[#allocation12 + $0x49]]
    %v845 = vstv %s844
    %v846 = vmul.f32 %v845, %v807
    %v847 = vadd.f32 %v831, %v846
    %s848 = sld [smem:[#allocation12 + $0x4a]]
    %v849 = vstv %s848
    %v850 = vmul.f32 %v849, %v807
    %v851 = vadd.f32 %v835, %v850
    %s852 = sld [smem:[#allocation12 + $0x4b]]
    %v853 = vstv %s852
    %v854 = vmul.f32 %v853, %v807
    %v855 = vadd.f32 %v839, %v854
    %856 = vrot.lane.b32.xlu0 %v654, 16
    %v857 = vpop.permute.xlu0 %856
    %v858 = vsel %vm123, %v857, %v654
    %859 = vrot.lane.b32.xlu0 %v858, 16
    %v860 = vpop.permute.xlu0 %859
    %v861 = vsel %vm123, %v860, %v654
    %863 = vrot.lane.b32.xlu0 %v861, 113
    %v864 = vpop.permute.xlu0 %863
    %v866 = vsel %vm113, %v864, 0.0
    %867 = vrot.lane.b32.xlu0 %v861, 127
    %v868 = vpop.permute.xlu0 %867
    %v870 = vsel %vm114, %v868, 0.0
    %s871 = sld [smem:[#allocation12 + $0xc]]
    %v872 = vstv %s871
    %v873 = vmul.f32 %v872, %v866
    %v874 = vadd.f32 %v843, %v873
    %s875 = sld [smem:[#allocation12 + $0xd]]
    %v876 = vstv %s875
    %v877 = vmul.f32 %v876, %v866
    %v878 = vadd.f32 %v847, %v877
    %s879 = sld [smem:[#allocation12 + $0xe]]
    %v880 = vstv %s879
    %v881 = vmul.f32 %v880, %v866
    %v882 = vadd.f32 %v851, %v881
    %s883 = sld [smem:[#allocation12 + $0xf]]
    %v884 = vstv %s883
    %v885 = vmul.f32 %v884, %v866
    %v886 = vadd.f32 %v855, %v885
    %s887 = sld [smem:[#allocation12 + $0x2c]]
    %v888 = vstv %s887
    %v889 = vmul.f32 %v888, %v654
    %v890 = vadd.f32 %v874, %v889
    %s891 = sld [smem:[#allocation12 + $0x2d]]
    %v892 = vstv %s891
    %v893 = vmul.f32 %v892, %v654
    %v894 = vadd.f32 %v878, %v893
    %s895 = sld [smem:[#allocation12 + $0x2e]]
    %v896 = vstv %s895
    %v897 = vmul.f32 %v896, %v654
    %v898 = vadd.f32 %v882, %v897
    %s899 = sld [smem:[#allocation12 + $0x2f]]
    %v900 = vstv %s899
    %v901 = vmul.f32 %v900, %v654
    %v902 = vadd.f32 %v886, %v901
    %s903 = sld [smem:[#allocation12 + $0x4c]]
    %v904 = vstv %s903
    %v905 = vmul.f32 %v904, %v870
    %v906 = vadd.f32 %v890, %v905
    %s907 = sld [smem:[#allocation12 + $0x4d]]
    %v908 = vstv %s907
    %v909 = vmul.f32 %v908, %v870
    %v910 = vadd.f32 %v894, %v909
    %s911 = sld [smem:[#allocation12 + $0x4e]]
    %v912 = vstv %s911
    %v913 = vmul.f32 %v912, %v870
    %v914 = vadd.f32 %v898, %v913
    %s915 = sld [smem:[#allocation12 + $0x4f]]
    %v916 = vstv %s915
    %v917 = vmul.f32 %v916, %v870
    %v918 = vadd.f32 %v902, %v917
    %919 = vrot.lane.b32.xlu0 %v655, 16
    %v920 = vpop.permute.xlu0 %919
    %v921 = vsel %vm123, %v920, %v655
    %922 = vrot.lane.b32.xlu0 %v921, 16
    %v923 = vpop.permute.xlu0 %922
    %v924 = vsel %vm123, %v923, %v655
    %926 = vrot.lane.b32.xlu0 %v924, 113
    %v927 = vpop.permute.xlu0 %926
    %v929 = vsel %vm113, %v927, 0.0
    %930 = vrot.lane.b32.xlu0 %v924, 127
    %v931 = vpop.permute.xlu0 %930
    %v933 = vsel %vm114, %v931, 0.0
    %s934 = sld [smem:[#allocation12 + $0x10]]
    %v935 = vstv %s934
    %v936 = vmul.f32 %v935, %v929
    %v937 = vadd.f32 %v906, %v936
    %s938 = sld [smem:[#allocation12 + $0x11]]
    %v939 = vstv %s938
    %v940 = vmul.f32 %v939, %v929
    %v941 = vadd.f32 %v910, %v940
    %s942 = sld [smem:[#allocation12 + $0x12]]
    %v943 = vstv %s942
    %v944 = vmul.f32 %v943, %v929
    %v945 = vadd.f32 %v914, %v944
    %s946 = sld [smem:[#allocation12 + $0x13]]
    %v947 = vstv %s946
    %v948 = vmul.f32 %v947, %v929
    %v949 = vadd.f32 %v918, %v948
    %s950 = sld [smem:[#allocation12 + $0x30]]
    %v951 = vstv %s950
    %v952 = vmul.f32 %v951, %v655
    %v953 = vadd.f32 %v937, %v952
    %s954 = sld [smem:[#allocation12 + $0x31]]
    %v955 = vstv %s954
    %v956 = vmul.f32 %v955, %v655
    %v957 = vadd.f32 %v941, %v956
    %s958 = sld [smem:[#allocation12 + $0x32]]
    %v959 = vstv %s958
    %v960 = vmul.f32 %v959, %v655
    %v961 = vadd.f32 %v945, %v960
    %s962 = sld [smem:[#allocation12 + $0x33]]
    %v963 = vstv %s962
    %v964 = vmul.f32 %v963, %v655
    %v965 = vadd.f32 %v949, %v964
    %s966 = sld [smem:[#allocation12 + $0x50]]
    %v967 = vstv %s966
    %v968 = vmul.f32 %v967, %v933
    %v969 = vadd.f32 %v953, %v968
    %s970 = sld [smem:[#allocation12 + $0x51]]
    %v971 = vstv %s970
    %v972 = vmul.f32 %v971, %v933
    %v973 = vadd.f32 %v957, %v972
    %s974 = sld [smem:[#allocation12 + $0x52]]
    %v975 = vstv %s974
    %v976 = vmul.f32 %v975, %v933
    %v977 = vadd.f32 %v961, %v976
    %s978 = sld [smem:[#allocation12 + $0x53]]
    %v979 = vstv %s978
    %v980 = vmul.f32 %v979, %v933
    %v981 = vadd.f32 %v965, %v980
    %982 = vrot.lane.b32.xlu0 %v656, 16
    %v983 = vpop.permute.xlu0 %982
    %v984 = vsel %vm123, %v983, %v656
    %985 = vrot.lane.b32.xlu0 %v984, 16
    %v986 = vpop.permute.xlu0 %985
    %v987 = vsel %vm123, %v986, %v656
    %989 = vrot.lane.b32.xlu0 %v987, 113
    %v990 = vpop.permute.xlu0 %989
    %v992 = vsel %vm113, %v990, 0.0
    %993 = vrot.lane.b32.xlu0 %v987, 127
    %v994 = vpop.permute.xlu0 %993
    %v996 = vsel %vm114, %v994, 0.0
    %s997 = sld [smem:[#allocation12 + $0x14]]
    %v998 = vstv %s997
    %v999 = vmul.f32 %v998, %v992
    %v1000 = vadd.f32 %v969, %v999
    %s1001 = sld [smem:[#allocation12 + $0x15]]
    %v1002 = vstv %s1001
    %v1003 = vmul.f32 %v1002, %v992
    %v1004 = vadd.f32 %v973, %v1003
    %s1005 = sld [smem:[#allocation12 + $0x16]]
    %v1006 = vstv %s1005
    %v1007 = vmul.f32 %v1006, %v992
    %v1008 = vadd.f32 %v977, %v1007
    %s1009 = sld [smem:[#allocation12 + $0x17]]
    %v1010 = vstv %s1009
    %v1011 = vmul.f32 %v1010, %v992
    %v1012 = vadd.f32 %v981, %v1011
    %s1013 = sld [smem:[#allocation12 + $0x34]]
    %v1014 = vstv %s1013
    %v1015 = vmul.f32 %v1014, %v656
    %v1016 = vadd.f32 %v1000, %v1015
    %s1017 = sld [smem:[#allocation12 + $0x35]]
    %v1018 = vstv %s1017
    %v1019 = vmul.f32 %v1018, %v656
    %v1020 = vadd.f32 %v1004, %v1019
    %s1021 = sld [smem:[#allocation12 + $0x36]]
    %v1022 = vstv %s1021
    %v1023 = vmul.f32 %v1022, %v656
    %v1024 = vadd.f32 %v1008, %v1023
    %s1025 = sld [smem:[#allocation12 + $0x37]]
    %v1026 = vstv %s1025
    %v1027 = vmul.f32 %v1026, %v656
    %v1028 = vadd.f32 %v1012, %v1027
    %s1029 = sld [smem:[#allocation12 + $0x54]]
    %v1030 = vstv %s1029
    %v1031 = vmul.f32 %v1030, %v996
    %v1032 = vadd.f32 %v1016, %v1031
    %s1033 = sld [smem:[#allocation12 + $0x55]]
    %v1034 = vstv %s1033
    %v1035 = vmul.f32 %v1034, %v996
    %v1036 = vadd.f32 %v1020, %v1035
    %s1037 = sld [smem:[#allocation12 + $0x56]]
    %v1038 = vstv %s1037
    %v1039 = vmul.f32 %v1038, %v996
    %v1040 = vadd.f32 %v1024, %v1039
    %s1041 = sld [smem:[#allocation12 + $0x57]]
    %v1042 = vstv %s1041
    %v1043 = vmul.f32 %v1042, %v996
    %v1044 = vadd.f32 %v1028, %v1043
    %1045 = vrot.lane.b32.xlu0 %v657, 16
    %v1046 = vpop.permute.xlu0 %1045
    %v1047 = vsel %vm123, %v1046, %v657
    %1048 = vrot.lane.b32.xlu0 %v1047, 16
    %v1049 = vpop.permute.xlu0 %1048
    %v1050 = vsel %vm123, %v1049, %v657
    %1052 = vrot.lane.b32.xlu0 %v1050, 113
    %v1053 = vpop.permute.xlu0 %1052
    %v1055 = vsel %vm113, %v1053, 0.0
    %1056 = vrot.lane.b32.xlu0 %v1050, 127
    %v1057 = vpop.permute.xlu0 %1056
    %v1059 = vsel %vm114, %v1057, 0.0
    %s1060 = sld [smem:[#allocation12 + $0x18]]
    %v1061 = vstv %s1060
    %v1062 = vmul.f32 %v1061, %v1055
    %v1063 = vadd.f32 %v1032, %v1062
    %s1064 = sld [smem:[#allocation12 + $0x19]]
    %v1065 = vstv %s1064
    %v1066 = vmul.f32 %v1065, %v1055
    %v1067 = vadd.f32 %v1036, %v1066
    %s1068 = sld [smem:[#allocation12 + $0x1a]]
    %v1069 = vstv %s1068
    %v1070 = vmul.f32 %v1069, %v1055
    %v1071 = vadd.f32 %v1040, %v1070
    %s1072 = sld [smem:[#allocation12 + $0x1b]]
    %v1073 = vstv %s1072
    %v1074 = vmul.f32 %v1073, %v1055
    %v1075 = vadd.f32 %v1044, %v1074
    %s1076 = sld [smem:[#allocation12 + $0x38]]
    %v1077 = vstv %s1076
    %v1078 = vmul.f32 %v1077, %v657
    %v1079 = vadd.f32 %v1063, %v1078
    %s1080 = sld [smem:[#allocation12 + $0x39]]
    %v1081 = vstv %s1080
    %v1082 = vmul.f32 %v1081, %v657
    %v1083 = vadd.f32 %v1067, %v1082
    %s1084 = sld [smem:[#allocation12 + $0x3a]]
    %v1085 = vstv %s1084
    %v1086 = vmul.f32 %v1085, %v657
    %v1087 = vadd.f32 %v1071, %v1086
    %s1088 = sld [smem:[#allocation12 + $0x3b]]
    %v1089 = vstv %s1088
    %v1090 = vmul.f32 %v1089, %v657
    %v1091 = vadd.f32 %v1075, %v1090
    %s1092 = sld [smem:[#allocation12 + $0x58]]
    %v1093 = vstv %s1092
    %v1094 = vmul.f32 %v1093, %v1059
    %v1095 = vadd.f32 %v1079, %v1094
    %s1096 = sld [smem:[#allocation12 + $0x59]]
    %v1097 = vstv %s1096
    %v1098 = vmul.f32 %v1097, %v1059
    %v1099 = vadd.f32 %v1083, %v1098
    %s1100 = sld [smem:[#allocation12 + $0x5a]]
    %v1101 = vstv %s1100
    %v1102 = vmul.f32 %v1101, %v1059
    %v1103 = vadd.f32 %v1087, %v1102
    %s1104 = sld [smem:[#allocation12 + $0x5b]]
    %v1105 = vstv %s1104
    %v1106 = vmul.f32 %v1105, %v1059
    %v1107 = vadd.f32 %v1091, %v1106
    %1108 = vrot.lane.b32.xlu0 %v658, 16
    %v1109 = vpop.permute.xlu0 %1108
    %v1110 = vsel %vm123, %v1109, %v658
    %1111 = vrot.lane.b32.xlu0 %v1110, 16
    %v1112 = vpop.permute.xlu0 %1111
    %v1113 = vsel %vm123, %v1112, %v658
    %1115 = vrot.lane.b32.xlu0 %v1113, 113
    %v1116 = vpop.permute.xlu0 %1115
    %v1118 = vsel %vm113, %v1116, 0.0
    %1119 = vrot.lane.b32.xlu0 %v1113, 127
    %v1120 = vpop.permute.xlu0 %1119
    %v1122 = vsel %vm114, %v1120, 0.0
    %s1123 = sld [smem:[#allocation12 + $0x1c]]
    %v1124 = vstv %s1123
    %v1125 = vmul.f32 %v1124, %v1118
    %v1126 = vadd.f32 %v1095, %v1125
    %s1127 = sld [smem:[#allocation12 + $0x1d]]
    %v1128 = vstv %s1127
    %v1129 = vmul.f32 %v1128, %v1118
    %v1130 = vadd.f32 %v1099, %v1129
    %s1131 = sld [smem:[#allocation12 + $0x1e]]
    %v1132 = vstv %s1131
    %v1133 = vmul.f32 %v1132, %v1118
    %v1134 = vadd.f32 %v1103, %v1133
    %s1135 = sld [smem:[#allocation12 + $0x1f]]
    %v1136 = vstv %s1135
    %v1137 = vmul.f32 %v1136, %v1118
    %v1138 = vadd.f32 %v1107, %v1137
    %s1139 = sld [smem:[#allocation12 + $0x3c]]
    %v1140 = vstv %s1139
    %v1141 = vmul.f32 %v1140, %v658
    %v1142 = vadd.f32 %v1126, %v1141
    %s1143 = sld [smem:[#allocation12 + $0x3d]]
    %v1144 = vstv %s1143
    %v1145 = vmul.f32 %v1144, %v658
    %v1146 = vadd.f32 %v1130, %v1145
    %s1147 = sld [smem:[#allocation12 + $0x3e]]
    %v1148 = vstv %s1147
    %v1149 = vmul.f32 %v1148, %v658
    %v1150 = vadd.f32 %v1134, %v1149
    %s1151 = sld [smem:[#allocation12 + $0x3f]]
    %v1152 = vstv %s1151
    %v1153 = vmul.f32 %v1152, %v658
    %v1154 = vadd.f32 %v1138, %v1153
    %s1155 = sld [smem:[#allocation12 + $0x5c]]
    %v1156 = vstv %s1155
    %v1157 = vmul.f32 %v1156, %v1122
    %v1158 = vadd.f32 %v1142, %v1157
    %s1159 = sld [smem:[#allocation12 + $0x5d]]
    %v1160 = vstv %s1159
    %v1161 = vmul.f32 %v1160, %v1122
    %v1162 = vadd.f32 %v1146, %v1161
    %s1163 = sld [smem:[#allocation12 + $0x5e]]
    %v1164 = vstv %s1163
    %v1165 = vmul.f32 %v1164, %v1122
    %v1166 = vadd.f32 %v1150, %v1165
    %s1167 = sld [smem:[#allocation12 + $0x5f]]
    %v1168 = vstv %s1167
    %v1169 = vmul.f32 %v1168, %v1122
    %v1170 = vadd.f32 %v1154, %v1169
    %v1171 = vmax.f32 %v1158, 0.0
    %v1172 = vmax.f32 %v1162, 0.0
    %v1173 = vmax.f32 %v1166, 0.0
    %v1174 = vmax.f32 %v1170, 0.0
    %vm1175 = vcmask 123904
    %v1176 = vsel %vm1175, %v1171, 0.0
    %1177 = vadd.xlane.f32.xlu0 %v1176
    %v1178 = vpop.xlane.xlu0 %1177
    %v1179 = vmul.f32 %v1178, 0.0625
    %v1180 = vsel %vm1175, %v1172, 0.0
    %1181 = vadd.xlane.f32.xlu0 %v1180
    %v1182 = vpop.xlane.xlu0 %1181
    %v1183 = vmul.f32 %v1182, 0.0625
    %v1184 = vsel %vm1175, %v1173, 0.0
    %1185 = vadd.xlane.f32.xlu0 %v1184
    %v1186 = vpop.xlane.xlu0 %1185
    %v1187 = vmul.f32 %v1186, 0.0625
    %v1188 = vsel %vm1175, %v1174, 0.0
    %1189 = vadd.xlane.f32.xlu0 %v1188
    %v1190 = vpop.xlane.xlu0 %1189
    %v1191 = vmul.f32 %v1190, 0.0625
    %vm1192 = vcmask 7168
    %v1193 = vsel %vm1192, %v1179, %v1183
    %vm1194 = vcmask 15360
    %v1195 = vsel %vm1194, %v1193, %v1187
    %vm1196 = vcmask 23552
    %v1197 = vsel %vm1196, %v1195, %v1191
    %vm1198 = vcmask 25600
    %1199 = vst.msk [vmem:[#allocation15] sm:$0x3] %vm1198, %v1197
    // Predicated region
    $region58: #{tpu_custom_call.1} parent=1 // pred_check
      _
    $region59: #{tpu_custom_call.1} parent=1 // pred_check_branch
      %1201 = sbr.rel (0) target = $region61
    $region60: #{tpu_custom_call.1} parent=1 // pred_region
      %s1203 = ssub.s32 32, 32
      %1204 = vsyncadd [#allocation4], %s1203
      %s1206 = sshll.u32 [#allocation15], 4
      %s1207 = int_to_ptr.vmem [resolvable:$true] %s1206
      %1209 = dma.vmem_to_hbm [thread:$0]  %s1207, 32, %s7, [#allocation4]
    $region61: #{tpu_custom_call.1} parent=1 // pred_fallthru
      _
    // Predicated region
    $region62: #{tpu_custom_call.1} parent=1 // pred_check
      _
    $region63: #{tpu_custom_call.1} parent=1 // pred_check_branch
      %1211 = sbr.rel (0) target = $region65
    $region64: #{tpu_custom_call.1} parent=1 // pred_region
      %1212 = dma.done [#allocation4], 32
    $region65: #{tpu_custom_call.1} parent=1 // pred_fallthru
      _
    %1213 = vsyncpa [#allocation3], 1
    %1214 = vsyncpa [#allocation4], 1
    %1215 = vsyncpa [#allocation5], 1
    %1216 = vsyncpa [#allocation8], 1
    %1217 = vsyncpa [#allocation11], 1
    %1218 = vsyncpa [#allocation14], 1

</llo_original>
